<compile_context>
chip_gen: v5e
topology: v5e:2x2
jax: 0.10.0
libtpu: 0.0.40
codegen_flags: <defaults>
</compile_context>

<pallas_src>
import jax
import jax.numpy as jnp
from jax.experimental import pallas as pl
from jax.experimental.pallas import tpu as pltpu

# Hyper-parameters from the PyTorch module.
vocab_size = 28        # not defined in the snippet; standard char vocab (a-z + ' ' + '.')
num_channels = 50
num_blocks = 5
kernel_size = 2        # the kernel below hard-codes the 2-tap causal conv

CPAD = 128                                   # lane-padded channel width
NW = 4 * num_blocks + 2                      # weight-matrix slab rows
NBIAS = 2 * num_blocks + 3                   # bias/fcp slab rows (before padding)
RES_W_IDX = 4 * num_blocks                   # residual 1x1 conv weight slot
WF_IDX = 4 * num_blocks + 1                  # final 1x1 conv weight slot
RES_B_IDX = 2 * num_blocks                   # residual bias row
BF_IDX = 2 * num_blocks + 1                  # final bias row
FCP_IDX = 2 * num_blocks + 2                 # first_char_prob row


def make_tcn_kernel(TB, L, nblocks, PAD, use_res0):
    """Kernel closure. Works on lane-padded (.., CPAD) tiles."""
    M = TB * L

    def conv2tap(buf, a, w1, w0, b, d):
        # a: (M, CPAD) current activation; buf: (TB, PAD+L, CPAD) scratch whose
        # first PAD rows are zero (the causal left pad).
        y = jnp.dot(a, w1, preferred_element_type=jnp.float32)
        if d < L:  # statically skip the dead tap-0 matmul when the shift is all-pad
            buf[:, PAD:, :] = a.reshape(TB, L, CPAD)
            sh = buf[:, PAD - d:PAD - d + L, :].reshape(M, CPAD)
            y = y + jnp.dot(sh, w0, preferred_element_type=jnp.float32)
        return y + b

    def kernel(x_ref, w_ref, b_ref, out_ref, buf):
        # Zero the causal left-pad region (cheap; keeps scratch semantics simple).
        buf[:, :PAD, :] = jnp.zeros((TB, PAD, CPAD), jnp.float32)

        h = x_ref[...].reshape(M, CPAD)              # (M, 128) activations
        for i in range(nblocks):
            d = 2 ** i
            w1_0 = w_ref[4 * i]
            w1_1 = w_ref[4 * i + 1]
            w2_0 = w_ref[4 * i + 2]
            w2_1 = w_ref[4 * i + 3]
            b1 = b_ref[2 * i:2 * i + 1, :]
            b2 = b_ref[2 * i + 1:2 * i + 2, :]

            y = jnp.maximum(conv2tap(buf, h, w1_1, w1_0, b1, d), 0.0)
            # TODO(synk): nn.Dropout(0.1) omitted -- eval-mode semantics (identity).
            y = jnp.maximum(conv2tap(buf, y, w2_1, w2_0, b2, d), 0.0)

            if i == 0 and use_res0:   # residual 1x1 conv only when channels differ
                res = (jnp.dot(h, w_ref[RES_W_IDX],
                               preferred_element_type=jnp.float32)
                       + b_ref[RES_B_IDX:RES_B_IDX + 1, :])
            else:
                res = h
            h = y + res

        logits = (jnp.dot(h, w_ref[WF_IDX], preferred_element_type=jnp.float32)
                  + b_ref[BF_IDX:BF_IDX + 1, :])             # (M, 128)
        fcp = b_ref[FCP_IDX:FCP_IDX + 1, :]                  # (1, 128)

        out_ref[:, 0:1, :] = jnp.broadcast_to(fcp[None, :, :], (TB, 1, CPAD))
        out_ref[:, 1:, :] = logits.reshape(TB, L, CPAD)

    return kernel


def init_params(key):
    """Deterministic parameter init (shapes match the PyTorch module)."""
    params = []
    keys = iter(jax.random.split(key, num_blocks * 8 + 6))
    for i in range(num_blocks):
        cin = vocab_size if i == 0 else num_channels
        cout = num_channels
        s1 = 1.0 / (cin * kernel_size) ** 0.5
        w1 = jax.random.uniform(next(keys), (cout, cin, kernel_size), jnp.float32, -s1, s1)
        b1 = jax.random.uniform(next(keys), (1, cout), jnp.float32, -s1, s1)
        s2 = 1.0 / (cout * kernel_size) ** 0.5
        w2 = jax.random.uniform(next(keys), (cout, cout, kernel_size), jnp.float32, -s2, s2)
        b2 = jax.random.uniform(next(keys), (1, cout), jnp.float32, -s2, s2)
        # Store conv taps pre-transposed as (Cin, Cout) matrices: tap0 = x[t-d], tap1 = x[t].
        params += [w1[:, :, 0].T, w1[:, :, 1].T, b1,
                   w2[:, :, 0].T, w2[:, :, 1].T, b2]
        if cin != cout:
            sr = 1.0 / cin ** 0.5
            wres = jax.random.uniform(next(keys), (cout, cin), jnp.float32, -sr, sr)
            bres = jax.random.uniform(next(keys), (1, cout), jnp.float32, -sr, sr)
            params += [wres.T, bres]
        else:
            next(keys), next(keys)  # keep key consumption uniform
    sf = 1.0 / num_channels ** 0.5
    wf = jax.random.uniform(next(keys), (vocab_size, num_channels), jnp.float32, -sf, sf)
    bf = jax.random.uniform(next(keys), (1, vocab_size), jnp.float32, -sf, sf)
    fcp = jax.random.normal(next(keys), (1, vocab_size), jnp.float32)  # first_char_prob
    params += [wf.T, bf, fcp]
    return params


def pack_params(params):
    """Pack the small logical params into two lane-padded slabs (one DMA each)."""
    def pad_mat(w):
        m = jnp.zeros((CPAD, CPAD), jnp.float32)
        return m.at[:w.shape[0], :w.shape[1]].set(w)

    def pad_row(b):
        r = jnp.zeros((CPAD,), jnp.float32)
        return r.at[:b.shape[-1]].set(b.reshape(-1))

    mats, rows = [], []
    res_w, res_b = None, None
    idx = 0
    for i in range(num_blocks):
        cin = vocab_size if i == 0 else num_channels
        w1_0, w1_1, b1, w2_0, w2_1, b2 = params[idx:idx + 6]
        idx += 6
        mats += [pad_mat(w1_0), pad_mat(w1_1), pad_mat(w2_0), pad_mat(w2_1)]
        rows += [pad_row(b1), pad_row(b2)]
        if cin != num_channels:
            wres, bres = params[idx:idx + 2]
            idx += 2
            res_w, res_b = pad_mat(wres), pad_row(bres)
    if res_w is None:
        res_w = jnp.zeros((CPAD, CPAD), jnp.float32)
        res_b = jnp.zeros((CPAD,), jnp.float32)
    wf, bf, fcp = params[idx:idx + 3]
    mats += [res_w, pad_mat(wf)]
    rows += [res_b, pad_row(bf), pad_row(fcp)]

    nb_pad = ((len(rows) + 7) // 8) * 8
    rows += [jnp.zeros((CPAD,), jnp.float32)] * (nb_pad - len(rows))
    return jnp.stack(mats), jnp.stack(rows)


@jax.jit
def tcn_forward(x_bvl, w_slab, b_slab):
    """x_bvl: (B, vocab_size, L) -> (B, vocab_size, L+1), matching PyTorch NCW."""
    B, V, L = x_bvl.shape
    if L == 0:  # PyTorch numel()==0 branch: just the expanded first_char_prob.
        fcp = b_slab[FCP_IDX, :V]
        return jnp.broadcast_to(fcp[None, :, None], (B, V, 1))

    # Batch blocking: keep >=2 grid steps (v7x megacore), but fill M = TB*L rows.
    TB = max(1, (B + 1) // 2)
    max_rows = 2048                       # keeps double-buffered blocks well under VMEM
    if TB * L > max_rows:
        TB = max(1, max_rows // L)
    G = (B + TB - 1) // TB
    B_pad = G * TB

    PAD = ((2 ** (num_blocks - 1) + 7) // 8) * 8   # causal left-pad rows (>= max dilation)
    use_res0 = (V != num_channels)

    x = jnp.transpose(x_bvl, (0, 2, 1)).astype(jnp.float32)        # (B, L, V)
    x = jnp.pad(x, ((0, B_pad - B), (0, 0), (0, CPAD - V)))        # (B_pad, L, 128)

    kernel = make_tcn_kernel(TB, L, num_blocks, PAD, use_res0)

    out = pl.pallas_call(
        kernel,
        grid=(G,),
        out_shape=jax.ShapeDtypeStruct((B_pad, L + 1, CPAD), jnp.float32),
        in_specs=[
            pl.BlockSpec((TB, L, CPAD), lambda g: (g, 0, 0)),
            pl.BlockSpec(w_slab.shape, lambda g: (0, 0, 0)),
            pl.BlockSpec(b_slab.shape, lambda g: (0, 0)),
        ],
        out_specs=pl.BlockSpec((TB, L + 1, CPAD), lambda g: (g, 0, 0)),
        scratch_shapes=[pltpu.VMEM((TB, PAD + L, CPAD), jnp.float32)],
        compiler_params=pltpu.CompilerParams(dimension_semantics=("parallel",)),
    )(x, w_slab, b_slab)

    return jnp.transpose(out[:B, :, :V], (0, 2, 1))                # (B, V, L+1)


def tcn_reference(x_bvl, params):
    """Plain-JAX reference with identical math, for a correctness check."""
    x = jnp.transpose(x_bvl, (0, 2, 1)).astype(jnp.float32)  # (B, L, V)
    B, L, V = x.shape
    idx = 0
    h = x
    for i in range(num_blocks):
        d = 2 ** i
        cin = vocab_size if i == 0 else num_channels
        w1_0, w1_1, b1, w2_0, w2_1, b2 = params[idx:idx + 6]
        idx += 6

        def cconv(inp, w0, w1, b, d=d):
            Li = inp.shape[1]
            if d >= Li:
                sh = jnp.zeros_like(inp)
            else:
                sh = jnp.concatenate(
                    [jnp.zeros_like(inp[:, :d]), inp[:, :Li - d]], axis=1)
            return inp @ w1 + sh @ w0 + b

        y = jax.nn.relu(cconv(h, w1_0, w1_1, b1))
        y = jax.nn.relu(cconv(y, w2_0, w2_1, b2))
        if cin != num_channels:
            wres, bres = params[idx:idx + 2]
            idx += 2
            res = h @ wres + bres
        else:
            res = h
        h = y + res
    wf, bf, fcp = params[idx:idx + 3]
    logits = h @ wf + bf
    first = jnp.broadcast_to(fcp[None], (B, 1, vocab_size))
    return jnp.transpose(jnp.concatenate([first, logits], axis=1), (0, 2, 1))


if __name__ == "__main__":
    key = jax.random.PRNGKey(0)
    kp, kx = jax.random.split(key)
    params = init_params(kp)
    w_slab, b_slab = pack_params(params)

    B, L = 2, 16
    idxs = jax.random.randint(kx, (B, L), 0, vocab_size)
    x_one_hot = jax.nn.one_hot(idxs, vocab_size, dtype=jnp.float32)   # (B, L, V)
    x = jnp.transpose(x_one_hot, (0, 2, 1))                           # (B, V, L) NCW

    out = tcn_forward(x, w_slab, b_slab)
    out = jax.block_until_ready(out)

    assert out.shape == (B, vocab_size, L + 1), out.shape
    ref = tcn_reference(x, params)
    assert jnp.allclose(out, ref, atol=1e-4, rtol=1e-4), \
        float(jnp.max(jnp.abs(out - ref)))

    print("KERNEL_OK")
</pallas_src>

<mosaic_0001>
module attributes {stable_mosaic.version = 11 : i64} {
  func.func @kernel(%arg0: i32, %arg1: memref<1x16x128xf32, #tpu.memory_space<vmem>>, %arg2: memref<22x128x128xf32, #tpu.memory_space<vmem>>, %arg3: memref<16x128xf32, #tpu.memory_space<vmem>>, %arg4: memref<1x17x128xf32, #tpu.memory_space<vmem>>, %arg5: memref<1x32x128xf32, #tpu.memory_space<vmem>>) attributes {dimension_semantics = [#tpu.dimension_semantics<parallel>], iteration_bounds = array<i64: 2>, scalar_prefetch = 0 : i64, scratch_operands = 1 : i64, tpu.core_type = #tpu.core_type<tc>, window_params = [{transform_indices = @transform_0, window_bounds = array<i64: 1, 16, 128>}, {pipeline_mode = #tpu.pipeline_mode<synchronous>, transform_indices = @transform_1, window_bounds = array<i64: 22, 128, 128>}, {pipeline_mode = #tpu.pipeline_mode<synchronous>, transform_indices = @transform_2, window_bounds = array<i64: 16, 128>}, {transform_indices = @transform_3, window_bounds = array<i64: 1, 17, 128>}]} {
    %cst = arith.constant 0.000000e+00 : f32
    %0 = vector.broadcast %cst : f32 to vector<1x16x128xf32>
    %c0 = arith.constant 0 : index
    %c0_0 = arith.constant 0 : index
    %c0_1 = arith.constant 0 : index
    %1 = vector.load %arg5[%c0, %c0_0, %c0_1] : memref<1x32x128xf32, #tpu.memory_space<vmem>>, vector<1x16x128xf32>
    tpu.vector_store %arg5[%c0, %c0_0, %c0_1], %0 {strides = array<i32>} : memref<1x32x128xf32, #tpu.memory_space<vmem>>, vector<1x16x128xf32>,
    %c0_2 = arith.constant 0 : index
    %c0_3 = arith.constant 0 : index
    %c0_4 = arith.constant 0 : index
    %2 = vector.load %arg1[%c0_2, %c0_3, %c0_4] : memref<1x16x128xf32, #tpu.memory_space<vmem>>, vector<1x16x128xf32>
    %3 = vector.shape_cast %2 : vector<1x16x128xf32> to vector<16x128xf32>
    %c0_5 = arith.constant 0 : index
    %c0_6 = arith.constant 0 : index
    %c0_7 = arith.constant 0 : index
    %4 = vector.load %arg2[%c0_5, %c0_6, %c0_7] : memref<22x128x128xf32, #tpu.memory_space<vmem>>, vector<1x128x128xf32>
    %5 = vector.shape_cast %4 : vector<1x128x128xf32> to vector<128x128xf32>
    %c1 = arith.constant 1 : index
    %c0_8 = arith.constant 0 : index
    %c0_9 = arith.constant 0 : index
    %6 = vector.load %arg2[%c1, %c0_8, %c0_9] : memref<22x128x128xf32, #tpu.memory_space<vmem>>, vector<1x128x128xf32>
    %7 = vector.shape_cast %6 : vector<1x128x128xf32> to vector<128x128xf32>
    %c2 = arith.constant 2 : index
    %c0_10 = arith.constant 0 : index
    %c0_11 = arith.constant 0 : index
    %8 = vector.load %arg2[%c2, %c0_10, %c0_11] : memref<22x128x128xf32, #tpu.memory_space<vmem>>, vector<1x128x128xf32>
    %9 = vector.shape_cast %8 : vector<1x128x128xf32> to vector<128x128xf32>
    %c3 = arith.constant 3 : index
    %c0_12 = arith.constant 0 : index
    %c0_13 = arith.constant 0 : index
    %10 = vector.load %arg2[%c3, %c0_12, %c0_13] : memref<22x128x128xf32, #tpu.memory_space<vmem>>, vector<1x128x128xf32>
    %11 = vector.shape_cast %10 : vector<1x128x128xf32> to vector<128x128xf32>
    %c0_14 = arith.constant 0 : index
    %c0_15 = arith.constant 0 : index
    %12 = vector.load %arg3[%c0_14, %c0_15] : memref<16x128xf32, #tpu.memory_space<vmem>>, vector<1x128xf32>
    %c1_16 = arith.constant 1 : index
    %c0_17 = arith.constant 0 : index
    %13 = vector.load %arg3[%c1_16, %c0_17] : memref<16x128xf32, #tpu.memory_space<vmem>>, vector<1x128xf32>
    %cst_18 = arith.constant dense<0.000000e+00> : vector<16x128xf32>
    %14 = tpu.matmul %3, %7, %cst_18 {dimension_numbers = #tpu.dot_dimension_numbers<[1], [0], [0], [1], [0, 0, 1, 1], [], []>} : vector<16x128xf32>, vector<128x128xf32>, vector<16x128xf32> -> vector<16x128xf32>
    %15 = vector.shape_cast %3 : vector<16x128xf32> to vector<1x16x128xf32>
    %c0_19 = arith.constant 0 : index
    %c16 = arith.constant 16 : index
    %c0_20 = arith.constant 0 : index
    %16 = vector.load %arg5[%c0_19, %c16, %c0_20] : memref<1x32x128xf32, #tpu.memory_space<vmem>>, vector<1x16x128xf32>
    tpu.vector_store %arg5[%c0_19, %c16, %c0_20], %15 {strides = array<i32>} : memref<1x32x128xf32, #tpu.memory_space<vmem>>, vector<1x16x128xf32>,
    %c0_21 = arith.constant 0 : index
    %c15 = arith.constant 15 : index
    %c0_22 = arith.constant 0 : index
    %17 = vector.load %arg5[%c0_21, %c15, %c0_22] : memref<1x32x128xf32, #tpu.memory_space<vmem>>, vector<1x16x128xf32>
    %18 = vector.shape_cast %17 : vector<1x16x128xf32> to vector<16x128xf32>
    %cst_23 = arith.constant dense<0.000000e+00> : vector<16x128xf32>
    %19 = tpu.matmul %18, %5, %cst_23 {dimension_numbers = #tpu.dot_dimension_numbers<[1], [0], [0], [1], [0, 0, 1, 1], [], []>} : vector<16x128xf32>, vector<128x128xf32>, vector<16x128xf32> -> vector<16x128xf32>
    %20 = arith.addf %14, %19 : vector<16x128xf32>
    %21 = vector.broadcast %12 : vector<1x128xf32> to vector<16x128xf32>
    %22 = arith.addf %20, %21 : vector<16x128xf32>
    %cst_24 = arith.constant 0.000000e+00 : f32
    %23 = vector.broadcast %cst_24 : f32 to vector<16x128xf32>
    %24 = arith.maximumf %22, %23 : vector<16x128xf32>
    %cst_25 = arith.constant dense<0.000000e+00> : vector<16x128xf32>
    %25 = tpu.matmul %24, %11, %cst_25 {dimension_numbers = #tpu.dot_dimension_numbers<[1], [0], [0], [1], [0, 0, 1, 1], [], []>} : vector<16x128xf32>, vector<128x128xf32>, vector<16x128xf32> -> vector<16x128xf32>
    %26 = vector.shape_cast %24 : vector<16x128xf32> to vector<1x16x128xf32>
    %c0_26 = arith.constant 0 : index
    %c16_27 = arith.constant 16 : index
    %c0_28 = arith.constant 0 : index
    %27 = vector.load %arg5[%c0_26, %c16_27, %c0_28] : memref<1x32x128xf32, #tpu.memory_space<vmem>>, vector<1x16x128xf32>
    tpu.vector_store %arg5[%c0_26, %c16_27, %c0_28], %26 {strides = array<i32>} : memref<1x32x128xf32, #tpu.memory_space<vmem>>, vector<1x16x128xf32>,
    %c0_29 = arith.constant 0 : index
    %c15_30 = arith.constant 15 : index
    %c0_31 = arith.constant 0 : index
    %28 = vector.load %arg5[%c0_29, %c15_30, %c0_31] : memref<1x32x128xf32, #tpu.memory_space<vmem>>, vector<1x16x128xf32>
    %29 = vector.shape_cast %28 : vector<1x16x128xf32> to vector<16x128xf32>
    %cst_32 = arith.constant dense<0.000000e+00> : vector<16x128xf32>
    %30 = tpu.matmul %29, %9, %cst_32 {dimension_numbers = #tpu.dot_dimension_numbers<[1], [0], [0], [1], [0, 0, 1, 1], [], []>} : vector<16x128xf32>, vector<128x128xf32>, vector<16x128xf32> -> vector<16x128xf32>
    %31 = arith.addf %25, %30 : vector<16x128xf32>
    %32 = vector.broadcast %13 : vector<1x128xf32> to vector<16x128xf32>
    %33 = arith.addf %31, %32 : vector<16x128xf32>
    %cst_33 = arith.constant 0.000000e+00 : f32
    %34 = vector.broadcast %cst_33 : f32 to vector<16x128xf32>
    %35 = arith.maximumf %33, %34 : vector<16x128xf32>
    %c20 = arith.constant 20 : index
    %c0_34 = arith.constant 0 : index
    %c0_35 = arith.constant 0 : index
    %36 = vector.load %arg2[%c20, %c0_34, %c0_35] : memref<22x128x128xf32, #tpu.memory_space<vmem>>, vector<1x128x128xf32>
    %37 = vector.shape_cast %36 : vector<1x128x128xf32> to vector<128x128xf32>
    %cst_36 = arith.constant dense<0.000000e+00> : vector<16x128xf32>
    %38 = tpu.matmul %3, %37, %cst_36 {dimension_numbers = #tpu.dot_dimension_numbers<[1], [0], [0], [1], [0, 0, 1, 1], [], []>} : vector<16x128xf32>, vector<128x128xf32>, vector<16x128xf32> -> vector<16x128xf32>
    %c10 = arith.constant 10 : index
    %c0_37 = arith.constant 0 : index
    %39 = vector.load %arg3[%c10, %c0_37] : memref<16x128xf32, #tpu.memory_space<vmem>>, vector<1x128xf32>
    %40 = vector.broadcast %39 : vector<1x128xf32> to vector<16x128xf32>
    %41 = arith.addf %38, %40 : vector<16x128xf32>
    %42 = arith.addf %35, %41 : vector<16x128xf32>
    %c4 = arith.constant 4 : index
    %c0_38 = arith.constant 0 : index
    %c0_39 = arith.constant 0 : index
    %43 = vector.load %arg2[%c4, %c0_38, %c0_39] : memref<22x128x128xf32, #tpu.memory_space<vmem>>, vector<1x128x128xf32>
    %44 = vector.shape_cast %43 : vector<1x128x128xf32> to vector<128x128xf32>
    %c5 = arith.constant 5 : index
    %c0_40 = arith.constant 0 : index
    %c0_41 = arith.constant 0 : index
    %45 = vector.load %arg2[%c5, %c0_40, %c0_41] : memref<22x128x128xf32, #tpu.memory_space<vmem>>, vector<1x128x128xf32>
    %46 = vector.shape_cast %45 : vector<1x128x128xf32> to vector<128x128xf32>
    %c6 = arith.constant 6 : index
    %c0_42 = arith.constant 0 : index
    %c0_43 = arith.constant 0 : index
    %47 = vector.load %arg2[%c6, %c0_42, %c0_43] : memref<22x128x128xf32, #tpu.memory_space<vmem>>, vector<1x128x128xf32>
    %48 = vector.shape_cast %47 : vector<1x128x128xf32> to vector<128x128xf32>
    %c7 = arith.constant 7 : index
    %c0_44 = arith.constant 0 : index
    %c0_45 = arith.constant 0 : index
    %49 = vector.load %arg2[%c7, %c0_44, %c0_45] : memref<22x128x128xf32, #tpu.memory_space<vmem>>, vector<1x128x128xf32>
    %50 = vector.shape_cast %49 : vector<1x128x128xf32> to vector<128x128xf32>
    %c2_46 = arith.constant 2 : index
    %c0_47 = arith.constant 0 : index
    %51 = vector.load %arg3[%c2_46, %c0_47] : memref<16x128xf32, #tpu.memory_space<vmem>>, vector<1x128xf32>
    %c3_48 = arith.constant 3 : index
    %c0_49 = arith.constant 0 : index
    %52 = vector.load %arg3[%c3_48, %c0_49] : memref<16x128xf32, #tpu.memory_space<vmem>>, vector<1x128xf32>
    %cst_50 = arith.constant dense<0.000000e+00> : vector<16x128xf32>
    %53 = tpu.matmul %42, %46, %cst_50 {dimension_numbers = #tpu.dot_dimension_numbers<[1], [0], [0], [1], [0, 0, 1, 1], [], []>} : vector<16x128xf32>, vector<128x128xf32>, vector<16x128xf32> -> vector<16x128xf32>
    %54 = vector.shape_cast %42 : vector<16x128xf32> to vector<1x16x128xf32>
    %c0_51 = arith.constant 0 : index
    %c16_52 = arith.constant 16 : index
    %c0_53 = arith.constant 0 : index
    %55 = vector.load %arg5[%c0_51, %c16_52, %c0_53] : memref<1x32x128xf32, #tpu.memory_space<vmem>>, vector<1x16x128xf32>
    tpu.vector_store %arg5[%c0_51, %c16_52, %c0_53], %54 {strides = array<i32>} : memref<1x32x128xf32, #tpu.memory_space<vmem>>, vector<1x16x128xf32>,
    %c0_54 = arith.constant 0 : index
    %c14 = arith.constant 14 : index
    %c0_55 = arith.constant 0 : index
    %56 = vector.load %arg5[%c0_54, %c14, %c0_55] : memref<1x32x128xf32, #tpu.memory_space<vmem>>, vector<1x16x128xf32>
    %57 = vector.shape_cast %56 : vector<1x16x128xf32> to vector<16x128xf32>
    %cst_56 = arith.constant dense<0.000000e+00> : vector<16x128xf32>
    %58 = tpu.matmul %57, %44, %cst_56 {dimension_numbers = #tpu.dot_dimension_numbers<[1], [0], [0], [1], [0, 0, 1, 1], [], []>} : vector<16x128xf32>, vector<128x128xf32>, vector<16x128xf32> -> vector<16x128xf32>
    %59 = arith.addf %53, %58 : vector<16x128xf32>
    %60 = vector.broadcast %51 : vector<1x128xf32> to vector<16x128xf32>
    %61 = arith.addf %59, %60 : vector<16x128xf32>
    %cst_57 = arith.constant 0.000000e+00 : f32
    %62 = vector.broadcast %cst_57 : f32 to vector<16x128xf32>
    %63 = arith.maximumf %61, %62 : vector<16x128xf32>
    %cst_58 = arith.constant dense<0.000000e+00> : vector<16x128xf32>
    %64 = tpu.matmul %63, %50, %cst_58 {dimension_numbers = #tpu.dot_dimension_numbers<[1], [0], [0], [1], [0, 0, 1, 1], [], []>} : vector<16x128xf32>, vector<128x128xf32>, vector<16x128xf32> -> vector<16x128xf32>
    %65 = vector.shape_cast %63 : vector<16x128xf32> to vector<1x16x128xf32>
    %c0_59 = arith.constant 0 : index
    %c16_60 = arith.constant 16 : index
    %c0_61 = arith.constant 0 : index
    %66 = vector.load %arg5[%c0_59, %c16_60, %c0_61] : memref<1x32x128xf32, #tpu.memory_space<vmem>>, vector<1x16x128xf32>
    tpu.vector_store %arg5[%c0_59, %c16_60, %c0_61], %65 {strides = array<i32>} : memref<1x32x128xf32, #tpu.memory_space<vmem>>, vector<1x16x128xf32>,
    %c0_62 = arith.constant 0 : index
    %c14_63 = arith.constant 14 : index
    %c0_64 = arith.constant 0 : index
    %67 = vector.load %arg5[%c0_62, %c14_63, %c0_64] : memref<1x32x128xf32, #tpu.memory_space<vmem>>, vector<1x16x128xf32>
    %68 = vector.shape_cast %67 : vector<1x16x128xf32> to vector<16x128xf32>
    %cst_65 = arith.constant dense<0.000000e+00> : vector<16x128xf32>
    %69 = tpu.matmul %68, %48, %cst_65 {dimension_numbers = #tpu.dot_dimension_numbers<[1], [0], [0], [1], [0, 0, 1, 1], [], []>} : vector<16x128xf32>, vector<128x128xf32>, vector<16x128xf32> -> vector<16x128xf32>
    %70 = arith.addf %64, %69 : vector<16x128xf32>
    %71 = vector.broadcast %52 : vector<1x128xf32> to vector<16x128xf32>
    %72 = arith.addf %70, %71 : vector<16x128xf32>
    %cst_66 = arith.constant 0.000000e+00 : f32
    %73 = vector.broadcast %cst_66 : f32 to vector<16x128xf32>
    %74 = arith.maximumf %72, %73 : vector<16x128xf32>
    %75 = arith.addf %74, %42 : vector<16x128xf32>
    %c8 = arith.constant 8 : index
    %c0_67 = arith.constant 0 : index
    %c0_68 = arith.constant 0 : index
    %76 = vector.load %arg2[%c8, %c0_67, %c0_68] : memref<22x128x128xf32, #tpu.memory_space<vmem>>, vector<1x128x128xf32>
    %77 = vector.shape_cast %76 : vector<1x128x128xf32> to vector<128x128xf32>
    %c9 = arith.constant 9 : index
    %c0_69 = arith.constant 0 : index
    %c0_70 = arith.constant 0 : index
    %78 = vector.load %arg2[%c9, %c0_69, %c0_70] : memref<22x128x128xf32, #tpu.memory_space<vmem>>, vector<1x128x128xf32>
    %79 = vector.shape_cast %78 : vector<1x128x128xf32> to vector<128x128xf32>
    %c10_71 = arith.constant 10 : index
    %c0_72 = arith.constant 0 : index
    %c0_73 = arith.constant 0 : index
    %80 = vector.load %arg2[%c10_71, %c0_72, %c0_73] : memref<22x128x128xf32, #tpu.memory_space<vmem>>, vector<1x128x128xf32>
    %81 = vector.shape_cast %80 : vector<1x128x128xf32> to vector<128x128xf32>
    %c11 = arith.constant 11 : index
    %c0_74 = arith.constant 0 : index
    %c0_75 = arith.constant 0 : index
    %82 = vector.load %arg2[%c11, %c0_74, %c0_75] : memref<22x128x128xf32, #tpu.memory_space<vmem>>, vector<1x128x128xf32>
    %83 = vector.shape_cast %82 : vector<1x128x128xf32> to vector<128x128xf32>
    %c4_76 = arith.constant 4 : index
    %c0_77 = arith.constant 0 : index
    %84 = vector.load %arg3[%c4_76, %c0_77] : memref<16x128xf32, #tpu.memory_space<vmem>>, vector<1x128xf32>
    %c5_78 = arith.constant 5 : index
    %c0_79 = arith.constant 0 : index
    %85 = vector.load %arg3[%c5_78, %c0_79] : memref<16x128xf32, #tpu.memory_space<vmem>>, vector<1x128xf32>
    %cst_80 = arith.constant dense<0.000000e+00> : vector<16x128xf32>
    %86 = tpu.matmul %75, %79, %cst_80 {dimension_numbers = #tpu.dot_dimension_numbers<[1], [0], [0], [1], [0, 0, 1, 1], [], []>} : vector<16x128xf32>, vector<128x128xf32>, vector<16x128xf32> -> vector<16x128xf32>
    %87 = vector.shape_cast %75 : vector<16x128xf32> to vector<1x16x128xf32>
    %c0_81 = arith.constant 0 : index
    %c16_82 = arith.constant 16 : index
    %c0_83 = arith.constant 0 : index
    %88 = vector.load %arg5[%c0_81, %c16_82, %c0_83] : memref<1x32x128xf32, #tpu.memory_space<vmem>>, vector<1x16x128xf32>
    tpu.vector_store %arg5[%c0_81, %c16_82, %c0_83], %87 {strides = array<i32>} : memref<1x32x128xf32, #tpu.memory_space<vmem>>, vector<1x16x128xf32>,
    %c0_84 = arith.constant 0 : index
    %c12 = arith.constant 12 : index
    %c0_85 = arith.constant 0 : index
    %89 = vector.load %arg5[%c0_84, %c12, %c0_85] : memref<1x32x128xf32, #tpu.memory_space<vmem>>, vector<1x16x128xf32>
    %90 = vector.shape_cast %89 : vector<1x16x128xf32> to vector<16x128xf32>
    %cst_86 = arith.constant dense<0.000000e+00> : vector<16x128xf32>
    %91 = tpu.matmul %90, %77, %cst_86 {dimension_numbers = #tpu.dot_dimension_numbers<[1], [0], [0], [1], [0, 0, 1, 1], [], []>} : vector<16x128xf32>, vector<128x128xf32>, vector<16x128xf32> -> vector<16x128xf32>
    %92 = arith.addf %86, %91 : vector<16x128xf32>
    %93 = vector.broadcast %84 : vector<1x128xf32> to vector<16x128xf32>
    %94 = arith.addf %92, %93 : vector<16x128xf32>
    %cst_87 = arith.constant 0.000000e+00 : f32
    %95 = vector.broadcast %cst_87 : f32 to vector<16x128xf32>
    %96 = arith.maximumf %94, %95 : vector<16x128xf32>
    %cst_88 = arith.constant dense<0.000000e+00> : vector<16x128xf32>
    %97 = tpu.matmul %96, %83, %cst_88 {dimension_numbers = #tpu.dot_dimension_numbers<[1], [0], [0], [1], [0, 0, 1, 1], [], []>} : vector<16x128xf32>, vector<128x128xf32>, vector<16x128xf32> -> vector<16x128xf32>
    %98 = vector.shape_cast %96 : vector<16x128xf32> to vector<1x16x128xf32>
    %c0_89 = arith.constant 0 : index
    %c16_90 = arith.constant 16 : index
    %c0_91 = arith.constant 0 : index
    %99 = vector.load %arg5[%c0_89, %c16_90, %c0_91] : memref<1x32x128xf32, #tpu.memory_space<vmem>>, vector<1x16x128xf32>
    tpu.vector_store %arg5[%c0_89, %c16_90, %c0_91], %98 {strides = array<i32>} : memref<1x32x128xf32, #tpu.memory_space<vmem>>, vector<1x16x128xf32>,
    %c0_92 = arith.constant 0 : index
    %c12_93 = arith.constant 12 : index
    %c0_94 = arith.constant 0 : index
    %100 = vector.load %arg5[%c0_92, %c12_93, %c0_94] : memref<1x32x128xf32, #tpu.memory_space<vmem>>, vector<1x16x128xf32>
    %101 = vector.shape_cast %100 : vector<1x16x128xf32> to vector<16x128xf32>
    %cst_95 = arith.constant dense<0.000000e+00> : vector<16x128xf32>
    %102 = tpu.matmul %101, %81, %cst_95 {dimension_numbers = #tpu.dot_dimension_numbers<[1], [0], [0], [1], [0, 0, 1, 1], [], []>} : vector<16x128xf32>, vector<128x128xf32>, vector<16x128xf32> -> vector<16x128xf32>
    %103 = arith.addf %97, %102 : vector<16x128xf32>
    %104 = vector.broadcast %85 : vector<1x128xf32> to vector<16x128xf32>
    %105 = arith.addf %103, %104 : vector<16x128xf32>
    %cst_96 = arith.constant 0.000000e+00 : f32
    %106 = vector.broadcast %cst_96 : f32 to vector<16x128xf32>
    %107 = arith.maximumf %105, %106 : vector<16x128xf32>
    %108 = arith.addf %107, %75 : vector<16x128xf32>
    %c12_97 = arith.constant 12 : index
    %c0_98 = arith.constant 0 : index
    %c0_99 = arith.constant 0 : index
    %109 = vector.load %arg2[%c12_97, %c0_98, %c0_99] : memref<22x128x128xf32, #tpu.memory_space<vmem>>, vector<1x128x128xf32>
    %110 = vector.shape_cast %109 : vector<1x128x128xf32> to vector<128x128xf32>
    %c13 = arith.constant 13 : index
    %c0_100 = arith.constant 0 : index
    %c0_101 = arith.constant 0 : index
    %111 = vector.load %arg2[%c13, %c0_100, %c0_101] : memref<22x128x128xf32, #tpu.memory_space<vmem>>, vector<1x128x128xf32>
    %112 = vector.shape_cast %111 : vector<1x128x128xf32> to vector<128x128xf32>
    %c14_102 = arith.constant 14 : index
    %c0_103 = arith.constant 0 : index
    %c0_104 = arith.constant 0 : index
    %113 = vector.load %arg2[%c14_102, %c0_103, %c0_104] : memref<22x128x128xf32, #tpu.memory_space<vmem>>, vector<1x128x128xf32>
    %114 = vector.shape_cast %113 : vector<1x128x128xf32> to vector<128x128xf32>
    %c15_105 = arith.constant 15 : index
    %c0_106 = arith.constant 0 : index
    %c0_107 = arith.constant 0 : index
    %115 = vector.load %arg2[%c15_105, %c0_106, %c0_107] : memref<22x128x128xf32, #tpu.memory_space<vmem>>, vector<1x128x128xf32>
    %116 = vector.shape_cast %115 : vector<1x128x128xf32> to vector<128x128xf32>
    %c6_108 = arith.constant 6 : index
    %c0_109 = arith.constant 0 : index
    %117 = vector.load %arg3[%c6_108, %c0_109] : memref<16x128xf32, #tpu.memory_space<vmem>>, vector<1x128xf32>
    %c7_110 = arith.constant 7 : index
    %c0_111 = arith.constant 0 : index
    %118 = vector.load %arg3[%c7_110, %c0_111] : memref<16x128xf32, #tpu.memory_space<vmem>>, vector<1x128xf32>
    %cst_112 = arith.constant dense<0.000000e+00> : vector<16x128xf32>
    %119 = tpu.matmul %108, %112, %cst_112 {dimension_numbers = #tpu.dot_dimension_numbers<[1], [0], [0], [1], [0, 0, 1, 1], [], []>} : vector<16x128xf32>, vector<128x128xf32>, vector<16x128xf32> -> vector<16x128xf32>
    %120 = vector.shape_cast %108 : vector<16x128xf32> to vector<1x16x128xf32>
    %c0_113 = arith.constant 0 : index
    %c16_114 = arith.constant 16 : index
    %c0_115 = arith.constant 0 : index
    %121 = vector.load %arg5[%c0_113, %c16_114, %c0_115] : memref<1x32x128xf32, #tpu.memory_space<vmem>>, vector<1x16x128xf32>
    tpu.vector_store %arg5[%c0_113, %c16_114, %c0_115], %120 {strides = array<i32>} : memref<1x32x128xf32, #tpu.memory_space<vmem>>, vector<1x16x128xf32>,
    %c0_116 = arith.constant 0 : index
    %c8_117 = arith.constant 8 : index
    %c0_118 = arith.constant 0 : index
    %122 = vector.load %arg5[%c0_116, %c8_117, %c0_118] : memref<1x32x128xf32, #tpu.memory_space<vmem>>, vector<1x16x128xf32>
    %123 = vector.shape_cast %122 : vector<1x16x128xf32> to vector<16x128xf32>
    %cst_119 = arith.constant dense<0.000000e+00> : vector<16x128xf32>
    %124 = tpu.matmul %123, %110, %cst_119 {dimension_numbers = #tpu.dot_dimension_numbers<[1], [0], [0], [1], [0, 0, 1, 1], [], []>} : vector<16x128xf32>, vector<128x128xf32>, vector<16x128xf32> -> vector<16x128xf32>
    %125 = arith.addf %119, %124 : vector<16x128xf32>
    %126 = vector.broadcast %117 : vector<1x128xf32> to vector<16x128xf32>
    %127 = arith.addf %125, %126 : vector<16x128xf32>
    %cst_120 = arith.constant 0.000000e+00 : f32
    %128 = vector.broadcast %cst_120 : f32 to vector<16x128xf32>
    %129 = arith.maximumf %127, %128 : vector<16x128xf32>
    %cst_121 = arith.constant dense<0.000000e+00> : vector<16x128xf32>
    %130 = tpu.matmul %129, %116, %cst_121 {dimension_numbers = #tpu.dot_dimension_numbers<[1], [0], [0], [1], [0, 0, 1, 1], [], []>} : vector<16x128xf32>, vector<128x128xf32>, vector<16x128xf32> -> vector<16x128xf32>
    %131 = vector.shape_cast %129 : vector<16x128xf32> to vector<1x16x128xf32>
    %c0_122 = arith.constant 0 : index
    %c16_123 = arith.constant 16 : index
    %c0_124 = arith.constant 0 : index
    %132 = vector.load %arg5[%c0_122, %c16_123, %c0_124] : memref<1x32x128xf32, #tpu.memory_space<vmem>>, vector<1x16x128xf32>
    tpu.vector_store %arg5[%c0_122, %c16_123, %c0_124], %131 {strides = array<i32>} : memref<1x32x128xf32, #tpu.memory_space<vmem>>, vector<1x16x128xf32>,
    %c0_125 = arith.constant 0 : index
    %c8_126 = arith.constant 8 : index
    %c0_127 = arith.constant 0 : index
    %133 = vector.load %arg5[%c0_125, %c8_126, %c0_127] : memref<1x32x128xf32, #tpu.memory_space<vmem>>, vector<1x16x128xf32>
    %134 = vector.shape_cast %133 : vector<1x16x128xf32> to vector<16x128xf32>
    %cst_128 = arith.constant dense<0.000000e+00> : vector<16x128xf32>
    %135 = tpu.matmul %134, %114, %cst_128 {dimension_numbers = #tpu.dot_dimension_numbers<[1], [0], [0], [1], [0, 0, 1, 1], [], []>} : vector<16x128xf32>, vector<128x128xf32>, vector<16x128xf32> -> vector<16x128xf32>
    %136 = arith.addf %130, %135 : vector<16x128xf32>
    %137 = vector.broadcast %118 : vector<1x128xf32> to vector<16x128xf32>
    %138 = arith.addf %136, %137 : vector<16x128xf32>
    %cst_129 = arith.constant 0.000000e+00 : f32
    %139 = vector.broadcast %cst_129 : f32 to vector<16x128xf32>
    %140 = arith.maximumf %138, %139 : vector<16x128xf32>
    %141 = arith.addf %140, %108 : vector<16x128xf32>
    %c17 = arith.constant 17 : index
    %c0_130 = arith.constant 0 : index
    %c0_131 = arith.constant 0 : index
    %142 = vector.load %arg2[%c17, %c0_130, %c0_131] : memref<22x128x128xf32, #tpu.memory_space<vmem>>, vector<1x128x128xf32>
    %143 = vector.shape_cast %142 : vector<1x128x128xf32> to vector<128x128xf32>
    %c19 = arith.constant 19 : index
    %c0_132 = arith.constant 0 : index
    %c0_133 = arith.constant 0 : index
    %144 = vector.load %arg2[%c19, %c0_132, %c0_133] : memref<22x128x128xf32, #tpu.memory_space<vmem>>, vector<1x128x128xf32>
    %145 = vector.shape_cast %144 : vector<1x128x128xf32> to vector<128x128xf32>
    %c8_134 = arith.constant 8 : index
    %c0_135 = arith.constant 0 : index
    %146 = vector.load %arg3[%c8_134, %c0_135] : memref<16x128xf32, #tpu.memory_space<vmem>>, vector<1x128xf32>
    %c9_136 = arith.constant 9 : index
    %c0_137 = arith.constant 0 : index
    %147 = vector.load %arg3[%c9_136, %c0_137] : memref<16x128xf32, #tpu.memory_space<vmem>>, vector<1x128xf32>
    %cst_138 = arith.constant dense<0.000000e+00> : vector<16x128xf32>
    %148 = tpu.matmul %141, %143, %cst_138 {dimension_numbers = #tpu.dot_dimension_numbers<[1], [0], [0], [1], [0, 0, 1, 1], [], []>} : vector<16x128xf32>, vector<128x128xf32>, vector<16x128xf32> -> vector<16x128xf32>
    %149 = vector.broadcast %146 : vector<1x128xf32> to vector<16x128xf32>
    %150 = arith.addf %148, %149 : vector<16x128xf32>
    %cst_139 = arith.constant 0.000000e+00 : f32
    %151 = vector.broadcast %cst_139 : f32 to vector<16x128xf32>
    %152 = arith.maximumf %150, %151 : vector<16x128xf32>
    %cst_140 = arith.constant dense<0.000000e+00> : vector<16x128xf32>
    %153 = tpu.matmul %152, %145, %cst_140 {dimension_numbers = #tpu.dot_dimension_numbers<[1], [0], [0], [1], [0, 0, 1, 1], [], []>} : vector<16x128xf32>, vector<128x128xf32>, vector<16x128xf32> -> vector<16x128xf32>
    %154 = vector.broadcast %147 : vector<1x128xf32> to vector<16x128xf32>
    %155 = arith.addf %153, %154 : vector<16x128xf32>
    %cst_141 = arith.constant 0.000000e+00 : f32
    %156 = vector.broadcast %cst_141 : f32 to vector<16x128xf32>
    %157 = arith.maximumf %155, %156 : vector<16x128xf32>
    %158 = arith.addf %157, %141 : vector<16x128xf32>
    %c21 = arith.constant 21 : index
    %c0_142 = arith.constant 0 : index
    %c0_143 = arith.constant 0 : index
    %159 = vector.load %arg2[%c21, %c0_142, %c0_143] : memref<22x128x128xf32, #tpu.memory_space<vmem>>, vector<1x128x128xf32>
    %160 = vector.shape_cast %159 : vector<1x128x128xf32> to vector<128x128xf32>
    %cst_144 = arith.constant dense<0.000000e+00> : vector<16x128xf32>
    %161 = tpu.matmul %158, %160, %cst_144 {dimension_numbers = #tpu.dot_dimension_numbers<[1], [0], [0], [1], [0, 0, 1, 1], [], []>} : vector<16x128xf32>, vector<128x128xf32>, vector<16x128xf32> -> vector<16x128xf32>
    %c11_145 = arith.constant 11 : index
    %c0_146 = arith.constant 0 : index
    %162 = vector.load %arg3[%c11_145, %c0_146] : memref<16x128xf32, #tpu.memory_space<vmem>>, vector<1x128xf32>
    %163 = vector.broadcast %162 : vector<1x128xf32> to vector<16x128xf32>
    %164 = arith.addf %161, %163 : vector<16x128xf32>
    %c12_147 = arith.constant 12 : index
    %c0_148 = arith.constant 0 : index
    %165 = vector.load %arg3[%c12_147, %c0_148] : memref<16x128xf32, #tpu.memory_space<vmem>>, vector<1x128xf32>
    %166 = vector.shape_cast %165 : vector<1x128xf32> to vector<1x1x128xf32>
    %c0_149 = arith.constant 0 : index
    %c0_150 = arith.constant 0 : index
    %c0_151 = arith.constant 0 : index
    %167 = vector.load %arg4[%c0_149, %c0_150, %c0_151] : memref<1x17x128xf32, #tpu.memory_space<vmem>>, vector<1x1x128xf32>
    tpu.vector_store %arg4[%c0_149, %c0_150, %c0_151], %166 {strides = array<i32>} : memref<1x17x128xf32, #tpu.memory_space<vmem>>, vector<1x1x128xf32>,
    %168 = vector.shape_cast %164 : vector<16x128xf32> to vector<1x16x128xf32>
    %c0_152 = arith.constant 0 : index
    %c1_153 = arith.constant 1 : index
    %c0_154 = arith.constant 0 : index
    %169 = vector.load %arg4[%c0_152, %c1_153, %c0_154] : memref<1x17x128xf32, #tpu.memory_space<vmem>>, vector<1x16x128xf32>
    tpu.vector_store %arg4[%c0_152, %c1_153, %c0_154], %168 {strides = array<i32>} : memref<1x17x128xf32, #tpu.memory_space<vmem>>, vector<1x16x128xf32>,
    return
  }
  func.func @transform_0(%arg0: i32) -> (i32, i32, i32) {
    %c0_i32 = arith.constant 0 : i32
    %c0_i32_0 = arith.constant 0 : i32
    %c0_i32_1 = arith.constant 0 : i32
    return %arg0, %c0_i32, %c0_i32_0 : i32, i32, i32
  }
  func.func @transform_1(%arg0: i32) -> (i32, i32, i32) {
    %c0_i32 = arith.constant 0 : i32
    %c0_i32_0 = arith.constant 0 : i32
    %c0_i32_1 = arith.constant 0 : i32
    %c0_i32_2 = arith.constant 0 : i32
    return %c0_i32, %c0_i32_0, %c0_i32_1 : i32, i32, i32
  }
  func.func @transform_2(%arg0: i32) -> (i32, i32) {
    %c0_i32 = arith.constant 0 : i32
    %c0_i32_0 = arith.constant 0 : i32
    %c0_i32_1 = arith.constant 0 : i32
    return %c0_i32, %c0_i32_0 : i32, i32
  }
  func.func @transform_3(%arg0: i32) -> (i32, i32, i32) {
    %c0_i32 = arith.constant 0 : i32
    %c0_i32_0 = arith.constant 0 : i32
    %c0_i32_1 = arith.constant 0 : i32
    return %arg0, %c0_i32, %c0_i32_0 : i32, i32, i32
  }
}

</mosaic_0001>

<llo_original>
// kernel: tcn_forward.1
$region0: #{tcn_forward.1}
  #allocation0 [shape = 'u32[]', space=smem, size = 0x4, offset = 0x4, fixed_abs, tag = 'smem constant byte address 0x4 - core index']
  #allocation1 [shape = 'u32[72,128]{1,0:T(1,128)}', space=vmem, size = 0x9000, scoped, tag = 'internal scratch']
  #allocation2 [shape = 'f32[1,32,128]{2,1,0:T(8,128)}', space=vmem, size = 0x4000, scoped, tag = 'scratch operand']
  %s0 = inlined_call_operand.vmem [shape: f32[2,16,128], index: 0, kind: input, shape index: {}]
  %s1 = inlined_call_operand.hbm [shape: f32[22,128,128], index: 1, kind: input, shape index: {}]
  %s2 = inlined_call_operand.hbm [shape: f32[16,128], index: 2, kind: input, shape index: {}]
  %s3 = inlined_call_operand.vmem [shape: f32[2,17,128], index: 3, kind: output, shape index: {}]
  %s4 = sld [smem:[#allocation0]]
  $region53: #{tcn_forward.1} parent=0
    _
  %s6 = ssub.s32 1, %s4
  %s7 = scalar_select 0, %s6, %s4
  $region1: #{tcn_forward.1} parent=0
    #allocation3 [shape = 'u8[1441792]{0}', space=vmem, size = 0x160000, scoped, tag = 'input window, operand 1, single buffered']
    #allocation4 [shape = 's32[2]{0}', space=sflag, size = 0x8, scoped, tag = 'scoped memory for tcn_forward.1']
    #allocation5 [shape = 'u8[8192]{0}', space=vmem, size = 0x2000, scoped, tag = 'input window, operand 2, single buffered']
    #allocation6 [shape = 's32[1]{0}', space=sflag, size = 0x4, scoped, tag = 'scoped memory for tcn_forward.1']
    %8 = vsyncpa [#allocation4], 0
    %9 = vsyncpa [#allocation6], 0
    loop: start=0, step=1, limit=4
    $region2: #{tcn_forward.1} parent=1 // loop_pre_header
      _
    $region3: #{tcn_forward.1} parent=1 // loop_header
      %s11 = sphi 0, %s15
      %p12 = scmp.ge.s32.totalorder %s11, 4
      %s21 = sphi 0, %s23
      %s24 = sphi 0, %s21
      %s25 = sphi 0, %s24
      %s41 = sphi 0, %s25
      %s45 = sphi 0, %s45
      %s47 = sphi 0, %s45
      %s48 = sphi 0, %s47
      %s62 = sphi 0, %s48
      %s66 = sphi 0, %s66
      %s68 = sphi 0, %s66
      %s69 = sphi 0, %s68
      %s83 = sphi 0, %s69
      %s89 = sphi 0, %s91
      %s92 = sphi 0, %s89
      %s93 = sphi 0, %s92
      %s109 = sphi 0, %s93
    $region4: #{tcn_forward.1} parent=1 // loop_header_branch
      %14 = sbr.rel (%p12) target = $region8
    $region5: #{tcn_forward.1} parent=1 // loop_body
      %s16 = ssub.s32 %s11, 1
      %s17 = ssub.s32 %s11, 2
      %s18 = sadd.s32 %s11, 1
      %s19 = ssub.s32 %s11, %s18
      %p20 = scmp.eq.s32.totalorder %s19, 0
      %s22 = sadd.s32 %s21, 1
      %s23 = scalar_select %p20, %s21, %s22
      %p26 = pneg %p20
      %p27 = scmp.eq.s32.totalorder %s11, 1
      %p28 = por %p26, %p27
      %p29 = scmp.ne.s32.totalorder %s21, %s24
      %p30 = scmp.eq.s32.totalorder %s11, 0
      %p31 = por %p29, %p30
      %p32 = scmp.ne.s32.totalorder %s21, %s24
      %p33 = scmp.eq.s32.totalorder %s16, 1
      %p34 = por %p32, %p33
      %p35 = scmp.ne.s32.totalorder %s24, %s25
      %p36 = scmp.eq.s32.totalorder %s16, 0
      %p37 = por %p35, %p36
      %p38 = scmp.ne.s32.totalorder %s24, %s25
      %p39 = scmp.eq.s32.totalorder %s17, 1
      %p40 = por %p38, %p39
      %p42 = scmp.ne.s32.totalorder %s25, %s41
      %p43 = scmp.eq.s32.totalorder %s17, 0
      %p44 = por %p42, %p43
      %s46 = sadd.s32 %s45, 1
      %p49 = scmp.eq.s32.totalorder %s11, 1
      %p50 = scmp.ne.s32.totalorder %s45, %s47
      %p51 = scmp.eq.s32.totalorder %s11, 0
      %p52 = por %p50, %p51
      %p53 = scmp.ne.s32.totalorder %s45, %s47
      %p54 = scmp.eq.s32.totalorder %s16, 1
      %p55 = por %p53, %p54
      %p56 = scmp.ne.s32.totalorder %s47, %s48
      %p57 = scmp.eq.s32.totalorder %s16, 0
      %p58 = por %p56, %p57
      %p59 = scmp.ne.s32.totalorder %s47, %s48
      %p60 = scmp.eq.s32.totalorder %s17, 1
      %p61 = por %p59, %p60
      %p63 = scmp.ne.s32.totalorder %s48, %s62
      %p64 = scmp.eq.s32.totalorder %s17, 0
      %p65 = por %p63, %p64
      %s67 = sadd.s32 %s66, 1
      %p70 = scmp.eq.s32.totalorder %s11, 1
      %p71 = scmp.ne.s32.totalorder %s66, %s68
      %p72 = scmp.eq.s32.totalorder %s11, 0
      %p73 = por %p71, %p72
      %p74 = scmp.ne.s32.totalorder %s66, %s68
      %p75 = scmp.eq.s32.totalorder %s16, 1
      %p76 = por %p74, %p75
      %p77 = scmp.ne.s32.totalorder %s68, %s69
      %p78 = scmp.eq.s32.totalorder %s16, 0
      %p79 = por %p77, %p78
      %p80 = scmp.ne.s32.totalorder %s68, %s69
      %p81 = scmp.eq.s32.totalorder %s17, 1
      %p82 = por %p80, %p81
      %p84 = scmp.ne.s32.totalorder %s69, %s83
      %p85 = scmp.eq.s32.totalorder %s17, 0
      %p86 = por %p84, %p85
      %s87 = ssub.s32 %s11, %s18
      %p88 = scmp.eq.s32.totalorder %s87, 0
      %s90 = sadd.s32 %s89, 1
      %s91 = scalar_select %p88, %s89, %s90
      %p94 = pneg %p88
      %p95 = scmp.eq.s32.totalorder %s11, 1
      %p96 = por %p94, %p95
      %p97 = scmp.ne.s32.totalorder %s89, %s92
      %p98 = scmp.eq.s32.totalorder %s11, 0
      %p99 = por %p97, %p98
      %p100 = scmp.ne.s32.totalorder %s89, %s92
      %p101 = scmp.eq.s32.totalorder %s16, 1
      %p102 = por %p100, %p101
      %p103 = scmp.ne.s32.totalorder %s92, %s93
      %p104 = scmp.eq.s32.totalorder %s16, 0
      %p105 = por %p103, %p104
      %p106 = scmp.ne.s32.totalorder %s92, %s93
      %p107 = scmp.eq.s32.totalorder %s17, 1
      %p108 = por %p106, %p107
      %p110 = scmp.ne.s32.totalorder %s93, %s109
      %p111 = scmp.eq.s32.totalorder %s17, 0
      %p112 = por %p110, %p111
      %p113 = scmp.le.s32.totalorder 1, %s11
      %p114 = scmp.lt.s32.totalorder %s11, 3
      %p115 = pnand %p113, %p114
      %p116 = pneg %p115
      // Predicated region
      $region9: #{tcn_forward.1} parent=5 // pred_check
        _
      $region10: #{tcn_forward.1} parent=5 // pred_check_branch
        %118 = sbr.rel (%p115) target = $region12
      $region11: #{tcn_forward.1} parent=5 // pred_region
        %s119 = ssub.s32 %s11, 1
        // Predicated region
        $region13: #{tcn_forward.1} parent=11 // pred_check
          %p120 = pneg %p58
        $region14: #{tcn_forward.1} parent=11 // pred_check_branch
          %122 = sbr.rel (%p120) target = $region16
        $region15: #{tcn_forward.1} parent=11 // pred_region
          %124 = vsyncadd [#allocation4], 0
          %s125 = sshll.u32 %s1, 4
          %s126 = int_to_ptr.hbm [resolvable:$true] %s125
          %s127 = sshll.u32 [#allocation3], 4
          %s128 = int_to_ptr.vmem [resolvable:$true] %s127
          %133 = dma.hbm_to_vmem [thread:$0]  %s126, 45056, %s128, [#allocation4], 128, 128, 8
        $region16: #{tcn_forward.1} parent=11 // pred_fallthru
          _
        // Predicated region
        $region17: #{tcn_forward.1} parent=11 // pred_check
          %p134 = pneg %p79
        $region18: #{tcn_forward.1} parent=11 // pred_check_branch
          %136 = sbr.rel (%p134) target = $region20
        $region19: #{tcn_forward.1} parent=11 // pred_region
          %138 = vsyncadd [#allocation6], 0
          %s139 = sshll.u32 %s2, 4
          %s140 = int_to_ptr.hbm [resolvable:$true] %s139
          %s141 = sshll.u32 [#allocation5], 4
          %s142 = int_to_ptr.vmem [resolvable:$true] %s141
          %147 = dma.hbm_to_vmem [thread:$0]  %s140, 256, %s142, [#allocation6], 128, 128, 8
        $region20: #{tcn_forward.1} parent=11 // pred_fallthru
          _
      $region12: #{tcn_forward.1} parent=5 // pred_fallthru
        _
      %p148 = scmp.lt.s32.totalorder %s11, 2
      // Predicated region
      $region21: #{tcn_forward.1} parent=5 // pred_check
        %p149 = pneg %p148
      $region22: #{tcn_forward.1} parent=5 // pred_check_branch
        %151 = sbr.rel (%p149) target = $region24
      $region23: #{tcn_forward.1} parent=5 // pred_region
        // Predicated region
        $region25: #{tcn_forward.1} parent=23 // pred_check
          %p152 = pneg %p31
        $region26: #{tcn_forward.1} parent=23 // pred_check_branch
          %154 = sbr.rel (%p152) target = $region28
        $region27: #{tcn_forward.1} parent=23 // pred_region
          %p155 = scmp.lt.s32.totalorder %s11, 1
          %s156 = scalar_select %p155, %s11, 1
          %s157 = smul.addr %s156, 2
          %s158 = smul.addr %s157, 8
          %s159 = scalar_lea.vmem %s0, %s158
        $region28: #{tcn_forward.1} parent=23 // pred_fallthru
          _
      $region24: #{tcn_forward.1} parent=5 // pred_fallthru
        _
      %p160 = scmp.le.s32.totalorder 1, %s11
      %p161 = scmp.lt.s32.totalorder %s11, 3
      %p162 = pnand %p160, %p161
      %p163 = pneg %p162
      // Predicated region
      $region29: #{tcn_forward.1} parent=5 // pred_check
        _
      $region30: #{tcn_forward.1} parent=5 // pred_check_branch
        %165 = sbr.rel (%p162) target = $region32
      $region31: #{tcn_forward.1} parent=5 // pred_region
        %s166 = ssub.s32 %s11, 1
        // Predicated region
        $region33: #{tcn_forward.1} parent=31 // pred_check
          %p167 = pneg %p58
        $region34: #{tcn_forward.1} parent=31 // pred_check_branch
          %169 = sbr.rel (%p167) target = $region36
        $region35: #{tcn_forward.1} parent=31 // pred_region
          %171 = dma.done [#allocation4], 45056
        $region36: #{tcn_forward.1} parent=31 // pred_fallthru
          _
        // Predicated region
        $region37: #{tcn_forward.1} parent=31 // pred_check
          %p172 = pneg %p79
        $region38: #{tcn_forward.1} parent=31 // pred_check_branch
          %174 = sbr.rel (%p172) target = $region40
        $region39: #{tcn_forward.1} parent=31 // pred_region
          %176 = dma.done [#allocation6], 256
        $region40: #{tcn_forward.1} parent=31 // pred_fallthru
          _
        %p177 = scmp.lt.s32.totalorder %s16, 1
        %s178 = scalar_select %p177, %s16, 1
        %s179 = smul.addr %s178, 2
        %s180 = smul.addr %s179, 8
        %s181 = scalar_lea.vmem %s0, %s180
        %p182 = pneg %p37
        %p183 = pneg %p34
        %p184 = pneg %p58
        %p185 = pneg %p55
        %p186 = pneg %p79
        %p187 = pneg %p76
        %p188 = pneg %p105
        %p189 = pneg %p102
        %p190 = scmp.lt.s32.totalorder %s16, 1
        %s191 = scalar_select %p190, %s16, 1
        %s192 = smul.addr %s191, 3
        %s193 = smul.addr %s192, 8
        %s194 = scalar_lea.vmem %s3, %s193
        %p195 = scmp.lt.s32.totalorder %s16, 1
        %s196 = scalar_select %p195, %s16, 1
        %s197 = smul.addr %s196, 2
        %s198 = smul.addr %s197, 8
        %s199 = scalar_lea.vmem %s0, %s198
        %p200 = scmp.lt.s32.totalorder %s16, 1
        %s201 = scalar_select %p200, %s16, 1
        %s202 = smul.addr %s201, 3
        %s203 = smul.addr %s202, 8
        %s204 = scalar_lea.vmem %s3, %s203
        %205 = vst [vmem:[#allocation2] sm:$0xff] 0.0
        %206 = vst [vmem:[#allocation2 + $0x8] sm:$0xff] 0.0
        %v207 = vld [vmem:[%s199] sm:$0xff]
        %v208 = vld [vmem:[%s199 + $0x8] sm:$0xff]
        %v209 = vld [vmem:[#allocation3] sm:$0xff]
        %v210 = vld [vmem:[#allocation3 + $0x8] sm:$0xff]
        %v211 = vld [vmem:[#allocation3 + $0x10] sm:$0xff]
        %v212 = vld [vmem:[#allocation3 + $0x18] sm:$0xff]
        %v213 = vld [vmem:[#allocation3 + $0x20] sm:$0xff]
        %v214 = vld [vmem:[#allocation3 + $0x28] sm:$0xff]
        %v215 = vld [vmem:[#allocation3 + $0x30] sm:$0xff]
        %v216 = vld [vmem:[#allocation3 + $0x38] sm:$0xff]
        %v217 = vld [vmem:[#allocation3 + $0x40] sm:$0xff]
        %v218 = vld [vmem:[#allocation3 + $0x48] sm:$0xff]
        %v219 = vld [vmem:[#allocation3 + $0x50] sm:$0xff]
        %v220 = vld [vmem:[#allocation3 + $0x58] sm:$0xff]
        %v221 = vld [vmem:[#allocation3 + $0x60] sm:$0xff]
        %v222 = vld [vmem:[#allocation3 + $0x68] sm:$0xff]
        %v223 = vld [vmem:[#allocation3 + $0x70] sm:$0xff]
        %v224 = vld [vmem:[#allocation3 + $0x78] sm:$0xff]
        %s225 = scalar_lea.vmem [#allocation3], 128
        %v226 = vld [vmem:[%s225] sm:$0xff]
        %v227 = vld [vmem:[%s225 + $0x8] sm:$0xff]
        %v228 = vld [vmem:[%s225 + $0x10] sm:$0xff]
        %v229 = vld [vmem:[%s225 + $0x18] sm:$0xff]
        %v230 = vld [vmem:[%s225 + $0x20] sm:$0xff]
        %v231 = vld [vmem:[%s225 + $0x28] sm:$0xff]
        %v232 = vld [vmem:[%s225 + $0x30] sm:$0xff]
        %v233 = vld [vmem:[%s225 + $0x38] sm:$0xff]
        %v234 = vld [vmem:[%s225 + $0x40] sm:$0xff]
        %v235 = vld [vmem:[%s225 + $0x48] sm:$0xff]
        %v236 = vld [vmem:[%s225 + $0x50] sm:$0xff]
        %v237 = vld [vmem:[%s225 + $0x58] sm:$0xff]
        %v238 = vld [vmem:[%s225 + $0x60] sm:$0xff]
        %v239 = vld [vmem:[%s225 + $0x68] sm:$0xff]
        %v240 = vld [vmem:[%s225 + $0x70] sm:$0xff]
        %v241 = vld [vmem:[%s225 + $0x78] sm:$0xff]
        %s242 = scalar_lea.vmem [#allocation3], 256
        %v243 = vld [vmem:[%s242] sm:$0xff]
        %v244 = vld [vmem:[%s242 + $0x8] sm:$0xff]
        %v245 = vld [vmem:[%s242 + $0x10] sm:$0xff]
        %v246 = vld [vmem:[%s242 + $0x18] sm:$0xff]
        %v247 = vld [vmem:[%s242 + $0x20] sm:$0xff]
        %v248 = vld [vmem:[%s242 + $0x28] sm:$0xff]
        %v249 = vld [vmem:[%s242 + $0x30] sm:$0xff]
        %v250 = vld [vmem:[%s242 + $0x38] sm:$0xff]
        %v251 = vld [vmem:[%s242 + $0x40] sm:$0xff]
        %v252 = vld [vmem:[%s242 + $0x48] sm:$0xff]
        %v253 = vld [vmem:[%s242 + $0x50] sm:$0xff]
        %v254 = vld [vmem:[%s242 + $0x58] sm:$0xff]
        %v255 = vld [vmem:[%s242 + $0x60] sm:$0xff]
        %v256 = vld [vmem:[%s242 + $0x68] sm:$0xff]
        %v257 = vld [vmem:[%s242 + $0x70] sm:$0xff]
        %v258 = vld [vmem:[%s242 + $0x78] sm:$0xff]
        %s259 = scalar_lea.vmem [#allocation3], 384
        %v260 = vld [vmem:[%s259] sm:$0xff]
        %v261 = vld [vmem:[%s259 + $0x8] sm:$0xff]
        %v262 = vld [vmem:[%s259 + $0x10] sm:$0xff]
        %v263 = vld [vmem:[%s259 + $0x18] sm:$0xff]
        %v264 = vld [vmem:[%s259 + $0x20] sm:$0xff]
        %v265 = vld [vmem:[%s259 + $0x28] sm:$0xff]
        %v266 = vld [vmem:[%s259 + $0x30] sm:$0xff]
        %v267 = vld [vmem:[%s259 + $0x38] sm:$0xff]
        %v268 = vld [vmem:[%s259 + $0x40] sm:$0xff]
        %v269 = vld [vmem:[%s259 + $0x48] sm:$0xff]
        %v270 = vld [vmem:[%s259 + $0x50] sm:$0xff]
        %v271 = vld [vmem:[%s259 + $0x58] sm:$0xff]
        %v272 = vld [vmem:[%s259 + $0x60] sm:$0xff]
        %v273 = vld [vmem:[%s259 + $0x68] sm:$0xff]
        %v274 = vld [vmem:[%s259 + $0x70] sm:$0xff]
        %v275 = vld [vmem:[%s259 + $0x78] sm:$0xff]
        %v276 = vld [vmem:[#allocation5] sm:$0x1]
        %v277 = vld [vmem:[#allocation5 + $0x1] sm:$0x1]
        %278 = vst [vmem:[#allocation2 + $0x10] sm:$0xff] %v207
        %279 = vst [vmem:[#allocation2 + $0x18] sm:$0xff] %v208
        %v280 = vld [vmem:[#allocation2 + $0xf] sm:$0xff]
        %v281 = vld [vmem:[#allocation2 + $0x17] sm:$0xff]
        %282 = vmatpush.msra.mxu0 %v224
        %283 = vmatpush.msra.mxu0 %v223
        %284 = vmatpush.msra.mxu0 %v222
        %285 = vmatpush.msra.mxu0 %v221
        %286 = vmatpush.msra.mxu0 %v220
        %287 = vmatpush.msra.mxu0 %v219
        %288 = vmatpush.msra.mxu0 %v218
        %289 = vmatpush.msra.mxu0 %v217
        %290 = vmatpush.msra.mxu0 %v216
        %291 = vmatpush.msra.mxu0 %v215
        %292 = vmatpush.msra.mxu0 %v214
        %293 = vmatpush.msra.mxu0 %v213
        %294 = vmatpush.msra.mxu0 %v212
        %295 = vmatpush.msra.mxu0 %v211
        %296 = vmatpush.msra.mxu0 %v210
        %297 = vmatpush.msra.mxu0 %v209
        %298 = vmatmul.f32.gmra.mxu0 %v280
        %v299 = vpop.f32.mrf.mxu0
        %v300 = vadd.f32 0.0, %v299
        %301 = vmatmul.f32.gmra.mxu0 %v281
        %v302 = vpop.f32.mrf.mxu0
        %v303 = vadd.f32 0.0, %v302
        %304 = vdwg.mxu0
        %305 = vmatpush.msra.mxu0 %v241
        %306 = vmatpush.msra.mxu0 %v240
        %307 = vmatpush.msra.mxu0 %v239
        %308 = vmatpush.msra.mxu0 %v238
        %309 = vmatpush.msra.mxu0 %v237
        %310 = vmatpush.msra.mxu0 %v236
        %311 = vmatpush.msra.mxu0 %v235
        %312 = vmatpush.msra.mxu0 %v234
        %313 = vmatpush.msra.mxu0 %v233
        %314 = vmatpush.msra.mxu0 %v232
        %315 = vmatpush.msra.mxu0 %v231
        %316 = vmatpush.msra.mxu0 %v230
        %317 = vmatpush.msra.mxu0 %v229
        %318 = vmatpush.msra.mxu0 %v228
        %319 = vmatpush.msra.mxu0 %v227
        %320 = vmatpush.msra.mxu0 %v226
        %321 = vmatmul.f32.gmra.mxu0 %v207
        %v322 = vpop.f32.mrf.mxu0
        %v323 = vadd.f32 %v300, %v322
        %324 = vmatmul.f32.gmra.mxu0 %v208
        %v325 = vpop.f32.mrf.mxu0
        %v326 = vadd.f32 %v303, %v325
        %327 = vdwg.mxu0
        %v328 = vperm.slane %v276, 0
        %v329 = vadd.f32 %v323, %v328
        %v330 = vadd.f32 %v326, %v328
        %v331 = vmax.f32 %v329, 0.0
        %v332 = vmax.f32 %v330, 0.0
        %333 = vst [vmem:[#allocation2 + $0x10] sm:$0xff] %v331
        %334 = vst [vmem:[#allocation2 + $0x18] sm:$0xff] %v332
        %v335 = vld [vmem:[#allocation2 + $0xf] sm:$0xff]
        %v336 = vld [vmem:[#allocation2 + $0x17] sm:$0xff]
        %337 = vmatpush.msra.mxu0 %v258
        %338 = vmatpush.msra.mxu0 %v257
        %339 = vmatpush.msra.mxu0 %v256
        %340 = vmatpush.msra.mxu0 %v255
        %341 = vmatpush.msra.mxu0 %v254
        %342 = vmatpush.msra.mxu0 %v253
        %343 = vmatpush.msra.mxu0 %v252
        %344 = vmatpush.msra.mxu0 %v251
        %345 = vmatpush.msra.mxu0 %v250
        %346 = vmatpush.msra.mxu0 %v249
        %347 = vmatpush.msra.mxu0 %v248
        %348 = vmatpush.msra.mxu0 %v247
        %349 = vmatpush.msra.mxu0 %v246
        %350 = vmatpush.msra.mxu0 %v245
        %351 = vmatpush.msra.mxu0 %v244
        %352 = vmatpush.msra.mxu0 %v243
        %353 = vmatmul.f32.gmra.mxu0 %v335
        %v354 = vpop.f32.mrf.mxu0
        %v355 = vadd.f32 0.0, %v354
        %356 = vmatmul.f32.gmra.mxu0 %v336
        %v357 = vpop.f32.mrf.mxu0
        %v358 = vadd.f32 0.0, %v357
        %359 = vdwg.mxu0
        %360 = vmatpush.msra.mxu0 %v275
        %361 = vmatpush.msra.mxu0 %v274
        %362 = vmatpush.msra.mxu0 %v273
        %363 = vmatpush.msra.mxu0 %v272
        %364 = vmatpush.msra.mxu0 %v271
        %365 = vmatpush.msra.mxu0 %v270
        %366 = vmatpush.msra.mxu0 %v269
        %367 = vmatpush.msra.mxu0 %v268
        %368 = vmatpush.msra.mxu0 %v267
        %369 = vmatpush.msra.mxu0 %v266
        %370 = vmatpush.msra.mxu0 %v265
        %371 = vmatpush.msra.mxu0 %v264
        %372 = vmatpush.msra.mxu0 %v263
        %373 = vmatpush.msra.mxu0 %v262
        %374 = vmatpush.msra.mxu0 %v261
        %375 = vmatpush.msra.mxu0 %v260
        %376 = vmatmul.f32.gmra.mxu0 %v331
        %v377 = vpop.f32.mrf.mxu0
        %v378 = vadd.f32 %v355, %v377
        %379 = vmatmul.f32.gmra.mxu0 %v332
        %v380 = vpop.f32.mrf.mxu0
        %v381 = vadd.f32 %v358, %v380
        %382 = vdwg.mxu0
        %v383 = vperm.slane %v277, 0
        %v384 = vadd.f32 %v378, %v383
        %v385 = vadd.f32 %v381, %v383
        %v386 = vmax.f32 %v384, 0.0
        %v387 = vmax.f32 %v385, 0.0
        %s388 = scalar_lea.vmem [#allocation3], 2560
        %v389 = vld [vmem:[%s388] sm:$0xff]
        %v390 = vld [vmem:[%s388 + $0x8] sm:$0xff]
        %v391 = vld [vmem:[%s388 + $0x10] sm:$0xff]
        %v392 = vld [vmem:[%s388 + $0x18] sm:$0xff]
        %v393 = vld [vmem:[%s388 + $0x20] sm:$0xff]
        %v394 = vld [vmem:[%s388 + $0x28] sm:$0xff]
        %v395 = vld [vmem:[%s388 + $0x30] sm:$0xff]
        %v396 = vld [vmem:[%s388 + $0x38] sm:$0xff]
        %v397 = vld [vmem:[%s388 + $0x40] sm:$0xff]
        %v398 = vld [vmem:[%s388 + $0x48] sm:$0xff]
        %v399 = vld [vmem:[%s388 + $0x50] sm:$0xff]
        %v400 = vld [vmem:[%s388 + $0x58] sm:$0xff]
        %v401 = vld [vmem:[%s388 + $0x60] sm:$0xff]
        %v402 = vld [vmem:[%s388 + $0x68] sm:$0xff]
        %v403 = vld [vmem:[%s388 + $0x70] sm:$0xff]
        %v404 = vld [vmem:[%s388 + $0x78] sm:$0xff]
        %v405 = vld [vmem:[#allocation5 + $0xa] sm:$0x1]
        %v406 = vperm.slane %v405, 0
        %407 = vmatpush.msra.mxu0 %v404
        %408 = vmatpush.msra.mxu0 %v403
        %409 = vmatpush.msra.mxu0 %v402
        %410 = vmatpush.msra.mxu0 %v401
        %411 = vmatpush.msra.mxu0 %v400
        %412 = vmatpush.msra.mxu0 %v399
        %413 = vmatpush.msra.mxu0 %v398
        %414 = vmatpush.msra.mxu0 %v397
        %415 = vmatpush.msra.mxu0 %v396
        %416 = vmatpush.msra.mxu0 %v395
        %417 = vmatpush.msra.mxu0 %v394
        %418 = vmatpush.msra.mxu0 %v393
        %419 = vmatpush.msra.mxu0 %v392
        %420 = vmatpush.msra.mxu0 %v391
        %421 = vmatpush.msra.mxu0 %v390
        %422 = vmatpush.msra.mxu0 %v389
        %423 = vmatmul.f32.gmra.mxu0 %v207
        %v424 = vpop.f32.mrf.mxu0
        %v425 = vadd.f32 %v406, %v424
        %426 = vmatmul.f32.gmra.mxu0 %v208
        %v427 = vpop.f32.mrf.mxu0
        %v428 = vadd.f32 %v406, %v427
        %429 = vdwg.mxu0
        %v430 = vadd.f32 %v386, %v425
        %v431 = vadd.f32 %v387, %v428
        %s432 = scalar_lea.vmem [#allocation3], 512
        %v433 = vld [vmem:[%s432] sm:$0xff]
        %v434 = vld [vmem:[%s432 + $0x8] sm:$0xff]
        %v435 = vld [vmem:[%s432 + $0x10] sm:$0xff]
        %v436 = vld [vmem:[%s432 + $0x18] sm:$0xff]
        %v437 = vld [vmem:[%s432 + $0x20] sm:$0xff]
        %v438 = vld [vmem:[%s432 + $0x28] sm:$0xff]
        %v439 = vld [vmem:[%s432 + $0x30] sm:$0xff]
        %v440 = vld [vmem:[%s432 + $0x38] sm:$0xff]
        %v441 = vld [vmem:[%s432 + $0x40] sm:$0xff]
        %v442 = vld [vmem:[%s432 + $0x48] sm:$0xff]
        %v443 = vld [vmem:[%s432 + $0x50] sm:$0xff]
        %v444 = vld [vmem:[%s432 + $0x58] sm:$0xff]
        %v445 = vld [vmem:[%s432 + $0x60] sm:$0xff]
        %v446 = vld [vmem:[%s432 + $0x68] sm:$0xff]
        %v447 = vld [vmem:[%s432 + $0x70] sm:$0xff]
        %v448 = vld [vmem:[%s432 + $0x78] sm:$0xff]
        %s449 = scalar_lea.vmem [#allocation3], 640
        %v450 = vld [vmem:[%s449] sm:$0xff]
        %v451 = vld [vmem:[%s449 + $0x8] sm:$0xff]
        %v452 = vld [vmem:[%s449 + $0x10] sm:$0xff]
        %v453 = vld [vmem:[%s449 + $0x18] sm:$0xff]
        %v454 = vld [vmem:[%s449 + $0x20] sm:$0xff]
        %v455 = vld [vmem:[%s449 + $0x28] sm:$0xff]
        %v456 = vld [vmem:[%s449 + $0x30] sm:$0xff]
        %v457 = vld [vmem:[%s449 + $0x38] sm:$0xff]
        %v458 = vld [vmem:[%s449 + $0x40] sm:$0xff]
        %v459 = vld [vmem:[%s449 + $0x48] sm:$0xff]
        %v460 = vld [vmem:[%s449 + $0x50] sm:$0xff]
        %v461 = vld [vmem:[%s449 + $0x58] sm:$0xff]
        %v462 = vld [vmem:[%s449 + $0x60] sm:$0xff]
        %v463 = vld [vmem:[%s449 + $0x68] sm:$0xff]
        %v464 = vld [vmem:[%s449 + $0x70] sm:$0xff]
        %v465 = vld [vmem:[%s449 + $0x78] sm:$0xff]
        %s466 = scalar_lea.vmem [#allocation3], 768
        %v467 = vld [vmem:[%s466] sm:$0xff]
        %v468 = vld [vmem:[%s466 + $0x8] sm:$0xff]
        %v469 = vld [vmem:[%s466 + $0x10] sm:$0xff]
        %v470 = vld [vmem:[%s466 + $0x18] sm:$0xff]
        %v471 = vld [vmem:[%s466 + $0x20] sm:$0xff]
        %v472 = vld [vmem:[%s466 + $0x28] sm:$0xff]
        %v473 = vld [vmem:[%s466 + $0x30] sm:$0xff]
        %v474 = vld [vmem:[%s466 + $0x38] sm:$0xff]
        %v475 = vld [vmem:[%s466 + $0x40] sm:$0xff]
        %v476 = vld [vmem:[%s466 + $0x48] sm:$0xff]
        %v477 = vld [vmem:[%s466 + $0x50] sm:$0xff]
        %v478 = vld [vmem:[%s466 + $0x58] sm:$0xff]
        %v479 = vld [vmem:[%s466 + $0x60] sm:$0xff]
        %v480 = vld [vmem:[%s466 + $0x68] sm:$0xff]
        %v481 = vld [vmem:[%s466 + $0x70] sm:$0xff]
        %v482 = vld [vmem:[%s466 + $0x78] sm:$0xff]
        %s483 = scalar_lea.vmem [#allocation3], 896
        %v484 = vld [vmem:[%s483] sm:$0xff]
        %v485 = vld [vmem:[%s483 + $0x8] sm:$0xff]
        %v486 = vld [vmem:[%s483 + $0x10] sm:$0xff]
        %v487 = vld [vmem:[%s483 + $0x18] sm:$0xff]
        %v488 = vld [vmem:[%s483 + $0x20] sm:$0xff]
        %v489 = vld [vmem:[%s483 + $0x28] sm:$0xff]
        %v490 = vld [vmem:[%s483 + $0x30] sm:$0xff]
        %v491 = vld [vmem:[%s483 + $0x38] sm:$0xff]
        %v492 = vld [vmem:[%s483 + $0x40] sm:$0xff]
        %v493 = vld [vmem:[%s483 + $0x48] sm:$0xff]
        %v494 = vld [vmem:[%s483 + $0x50] sm:$0xff]
        %v495 = vld [vmem:[%s483 + $0x58] sm:$0xff]
        %v496 = vld [vmem:[%s483 + $0x60] sm:$0xff]
        %v497 = vld [vmem:[%s483 + $0x68] sm:$0xff]
        %v498 = vld [vmem:[%s483 + $0x70] sm:$0xff]
        %v499 = vld [vmem:[%s483 + $0x78] sm:$0xff]
        %v500 = vld [vmem:[#allocation5 + $0x2] sm:$0x1]
        %v501 = vld [vmem:[#allocation5 + $0x3] sm:$0x1]
        %502 = vst [vmem:[#allocation2 + $0x10] sm:$0xff] %v430
        %503 = vst [vmem:[#allocation2 + $0x18] sm:$0xff] %v431
        %v504 = vld [vmem:[#allocation2 + $0xe] sm:$0xff]
        %v505 = vld [vmem:[#allocation2 + $0x16] sm:$0xff]
        %506 = vmatpush.msra.mxu0 %v448
        %507 = vmatpush.msra.mxu0 %v447
        %508 = vmatpush.msra.mxu0 %v446
        %509 = vmatpush.msra.mxu0 %v445
        %510 = vmatpush.msra.mxu0 %v444
        %511 = vmatpush.msra.mxu0 %v443
        %512 = vmatpush.msra.mxu0 %v442
        %513 = vmatpush.msra.mxu0 %v441
        %514 = vmatpush.msra.mxu0 %v440
        %515 = vmatpush.msra.mxu0 %v439
        %516 = vmatpush.msra.mxu0 %v438
        %517 = vmatpush.msra.mxu0 %v437
        %518 = vmatpush.msra.mxu0 %v436
        %519 = vmatpush.msra.mxu0 %v435
        %520 = vmatpush.msra.mxu0 %v434
        %521 = vmatpush.msra.mxu0 %v433
        %522 = vmatmul.f32.gmra.mxu0 %v504
        %v523 = vpop.f32.mrf.mxu0
        %v524 = vadd.f32 0.0, %v523
        %525 = vmatmul.f32.gmra.mxu0 %v505
        %v526 = vpop.f32.mrf.mxu0
        %v527 = vadd.f32 0.0, %v526
        %528 = vdwg.mxu0
        %529 = vmatpush.msra.mxu0 %v465
        %530 = vmatpush.msra.mxu0 %v464
        %531 = vmatpush.msra.mxu0 %v463
        %532 = vmatpush.msra.mxu0 %v462
        %533 = vmatpush.msra.mxu0 %v461
        %534 = vmatpush.msra.mxu0 %v460
        %535 = vmatpush.msra.mxu0 %v459
        %536 = vmatpush.msra.mxu0 %v458
        %537 = vmatpush.msra.mxu0 %v457
        %538 = vmatpush.msra.mxu0 %v456
        %539 = vmatpush.msra.mxu0 %v455
        %540 = vmatpush.msra.mxu0 %v454
        %541 = vmatpush.msra.mxu0 %v453
        %542 = vmatpush.msra.mxu0 %v452
        %543 = vmatpush.msra.mxu0 %v451
        %544 = vmatpush.msra.mxu0 %v450
        %545 = vmatmul.f32.gmra.mxu0 %v430
        %v546 = vpop.f32.mrf.mxu0
        %v547 = vadd.f32 %v524, %v546
        %548 = vmatmul.f32.gmra.mxu0 %v431
        %v549 = vpop.f32.mrf.mxu0
        %v550 = vadd.f32 %v527, %v549
        %551 = vdwg.mxu0
        %v552 = vperm.slane %v500, 0
        %v553 = vadd.f32 %v547, %v552
        %v554 = vadd.f32 %v550, %v552
        %v555 = vmax.f32 %v553, 0.0
        %v556 = vmax.f32 %v554, 0.0
        %557 = vst [vmem:[#allocation2 + $0x10] sm:$0xff] %v555
        %558 = vst [vmem:[#allocation2 + $0x18] sm:$0xff] %v556
        %v559 = vld [vmem:[#allocation2 + $0xe] sm:$0xff]
        %v560 = vld [vmem:[#allocation2 + $0x16] sm:$0xff]
        %561 = vmatpush.msra.mxu0 %v482
        %562 = vmatpush.msra.mxu0 %v481
        %563 = vmatpush.msra.mxu0 %v480
        %564 = vmatpush.msra.mxu0 %v479
        %565 = vmatpush.msra.mxu0 %v478
        %566 = vmatpush.msra.mxu0 %v477
        %567 = vmatpush.msra.mxu0 %v476
        %568 = vmatpush.msra.mxu0 %v475
        %569 = vmatpush.msra.mxu0 %v474
        %570 = vmatpush.msra.mxu0 %v473
        %571 = vmatpush.msra.mxu0 %v472
        %572 = vmatpush.msra.mxu0 %v471
        %573 = vmatpush.msra.mxu0 %v470
        %574 = vmatpush.msra.mxu0 %v469
        %575 = vmatpush.msra.mxu0 %v468
        %576 = vmatpush.msra.mxu0 %v467
        %577 = vmatmul.f32.gmra.mxu0 %v559
        %v578 = vpop.f32.mrf.mxu0
        %v579 = vadd.f32 0.0, %v578
        %580 = vmatmul.f32.gmra.mxu0 %v560
        %v581 = vpop.f32.mrf.mxu0
        %v582 = vadd.f32 0.0, %v581
        %583 = vdwg.mxu0
        %584 = vmatpush.msra.mxu0 %v499
        %585 = vmatpush.msra.mxu0 %v498
        %586 = vmatpush.msra.mxu0 %v497
        %587 = vmatpush.msra.mxu0 %v496
        %588 = vmatpush.msra.mxu0 %v495
        %589 = vmatpush.msra.mxu0 %v494
        %590 = vmatpush.msra.mxu0 %v493
        %591 = vmatpush.msra.mxu0 %v492
        %592 = vmatpush.msra.mxu0 %v491
        %593 = vmatpush.msra.mxu0 %v490
        %594 = vmatpush.msra.mxu0 %v489
        %595 = vmatpush.msra.mxu0 %v488
        %596 = vmatpush.msra.mxu0 %v487
        %597 = vmatpush.msra.mxu0 %v486
        %598 = vmatpush.msra.mxu0 %v485
        %599 = vmatpush.msra.mxu0 %v484
        %600 = vmatmul.f32.gmra.mxu0 %v555
        %v601 = vpop.f32.mrf.mxu0
        %v602 = vadd.f32 %v579, %v601
        %603 = vmatmul.f32.gmra.mxu0 %v556
        %v604 = vpop.f32.mrf.mxu0
        %v605 = vadd.f32 %v582, %v604
        %606 = vdwg.mxu0
        %v607 = vperm.slane %v501, 0
        %v608 = vadd.f32 %v602, %v607
        %v609 = vadd.f32 %v605, %v607
        %v610 = vmax.f32 %v608, 0.0
        %v611 = vmax.f32 %v609, 0.0
        %v612 = vadd.f32 %v610, %v430
        %v613 = vadd.f32 %v611, %v431
        %s614 = scalar_lea.vmem [#allocation3], 1024
        %v615 = vld [vmem:[%s614] sm:$0xff]
        %v616 = vld [vmem:[%s614 + $0x8] sm:$0xff]
        %v617 = vld [vmem:[%s614 + $0x10] sm:$0xff]
        %v618 = vld [vmem:[%s614 + $0x18] sm:$0xff]
        %v619 = vld [vmem:[%s614 + $0x20] sm:$0xff]
        %v620 = vld [vmem:[%s614 + $0x28] sm:$0xff]
        %v621 = vld [vmem:[%s614 + $0x30] sm:$0xff]
        %v622 = vld [vmem:[%s614 + $0x38] sm:$0xff]
        %v623 = vld [vmem:[%s614 + $0x40] sm:$0xff]
        %v624 = vld [vmem:[%s614 + $0x48] sm:$0xff]
        %v625 = vld [vmem:[%s614 + $0x50] sm:$0xff]
        %v626 = vld [vmem:[%s614 + $0x58] sm:$0xff]
        %v627 = vld [vmem:[%s614 + $0x60] sm:$0xff]
        %v628 = vld [vmem:[%s614 + $0x68] sm:$0xff]
        %v629 = vld [vmem:[%s614 + $0x70] sm:$0xff]
        %v630 = vld [vmem:[%s614 + $0x78] sm:$0xff]
        %s631 = scalar_lea.vmem [#allocation3], 1152
        %v632 = vld [vmem:[%s631] sm:$0xff]
        %v633 = vld [vmem:[%s631 + $0x8] sm:$0xff]
        %v634 = vld [vmem:[%s631 + $0x10] sm:$0xff]
        %v635 = vld [vmem:[%s631 + $0x18] sm:$0xff]
        %v636 = vld [vmem:[%s631 + $0x20] sm:$0xff]
        %v637 = vld [vmem:[%s631 + $0x28] sm:$0xff]
        %v638 = vld [vmem:[%s631 + $0x30] sm:$0xff]
        %v639 = vld [vmem:[%s631 + $0x38] sm:$0xff]
        %v640 = vld [vmem:[%s631 + $0x40] sm:$0xff]
        %v641 = vld [vmem:[%s631 + $0x48] sm:$0xff]
        %v642 = vld [vmem:[%s631 + $0x50] sm:$0xff]
        %v643 = vld [vmem:[%s631 + $0x58] sm:$0xff]
        %v644 = vld [vmem:[%s631 + $0x60] sm:$0xff]
        %v645 = vld [vmem:[%s631 + $0x68] sm:$0xff]
        %v646 = vld [vmem:[%s631 + $0x70] sm:$0xff]
        %v647 = vld [vmem:[%s631 + $0x78] sm:$0xff]
        %s648 = scalar_lea.vmem [#allocation3], 1280
        %v649 = vld [vmem:[%s648] sm:$0xff]
        %v650 = vld [vmem:[%s648 + $0x8] sm:$0xff]
        %v651 = vld [vmem:[%s648 + $0x10] sm:$0xff]
        %v652 = vld [vmem:[%s648 + $0x18] sm:$0xff]
        %v653 = vld [vmem:[%s648 + $0x20] sm:$0xff]
        %v654 = vld [vmem:[%s648 + $0x28] sm:$0xff]
        %v655 = vld [vmem:[%s648 + $0x30] sm:$0xff]
        %v656 = vld [vmem:[%s648 + $0x38] sm:$0xff]
        %v657 = vld [vmem:[%s648 + $0x40] sm:$0xff]
        %v658 = vld [vmem:[%s648 + $0x48] sm:$0xff]
        %v659 = vld [vmem:[%s648 + $0x50] sm:$0xff]
        %v660 = vld [vmem:[%s648 + $0x58] sm:$0xff]
        %v661 = vld [vmem:[%s648 + $0x60] sm:$0xff]
        %v662 = vld [vmem:[%s648 + $0x68] sm:$0xff]
        %v663 = vld [vmem:[%s648 + $0x70] sm:$0xff]
        %v664 = vld [vmem:[%s648 + $0x78] sm:$0xff]
        %s665 = scalar_lea.vmem [#allocation3], 1408
        %v666 = vld [vmem:[%s665] sm:$0xff]
        %v667 = vld [vmem:[%s665 + $0x8] sm:$0xff]
        %v668 = vld [vmem:[%s665 + $0x10] sm:$0xff]
        %v669 = vld [vmem:[%s665 + $0x18] sm:$0xff]
        %v670 = vld [vmem:[%s665 + $0x20] sm:$0xff]
        %v671 = vld [vmem:[%s665 + $0x28] sm:$0xff]
        %v672 = vld [vmem:[%s665 + $0x30] sm:$0xff]
        %v673 = vld [vmem:[%s665 + $0x38] sm:$0xff]
        %v674 = vld [vmem:[%s665 + $0x40] sm:$0xff]
        %v675 = vld [vmem:[%s665 + $0x48] sm:$0xff]
        %v676 = vld [vmem:[%s665 + $0x50] sm:$0xff]
        %v677 = vld [vmem:[%s665 + $0x58] sm:$0xff]
        %v678 = vld [vmem:[%s665 + $0x60] sm:$0xff]
        %v679 = vld [vmem:[%s665 + $0x68] sm:$0xff]
        %v680 = vld [vmem:[%s665 + $0x70] sm:$0xff]
        %v681 = vld [vmem:[%s665 + $0x78] sm:$0xff]
        %v682 = vld [vmem:[#allocation5 + $0x4] sm:$0x1]
        %v683 = vld [vmem:[#allocation5 + $0x5] sm:$0x1]
        %684 = vst [vmem:[#allocation2 + $0x10] sm:$0xff] %v612
        %685 = vst [vmem:[#allocation2 + $0x18] sm:$0xff] %v613
        %v686 = vld [vmem:[#allocation2 + $0xc] sm:$0xff]
        %v687 = vld [vmem:[#allocation2 + $0x14] sm:$0xff]
        %688 = vmatpush.msra.mxu0 %v630
        %689 = vmatpush.msra.mxu0 %v629
        %690 = vmatpush.msra.mxu0 %v628
        %691 = vmatpush.msra.mxu0 %v627
        %692 = vmatpush.msra.mxu0 %v626
        %693 = vmatpush.msra.mxu0 %v625
        %694 = vmatpush.msra.mxu0 %v624
        %695 = vmatpush.msra.mxu0 %v623
        %696 = vmatpush.msra.mxu0 %v622
        %697 = vmatpush.msra.mxu0 %v621
        %698 = vmatpush.msra.mxu0 %v620
        %699 = vmatpush.msra.mxu0 %v619
        %700 = vmatpush.msra.mxu0 %v618
        %701 = vmatpush.msra.mxu0 %v617
        %702 = vmatpush.msra.mxu0 %v616
        %703 = vmatpush.msra.mxu0 %v615
        %704 = vmatmul.f32.gmra.mxu0 %v686
        %v705 = vpop.f32.mrf.mxu0
        %v706 = vadd.f32 0.0, %v705
        %707 = vmatmul.f32.gmra.mxu0 %v687
        %v708 = vpop.f32.mrf.mxu0
        %v709 = vadd.f32 0.0, %v708
        %710 = vdwg.mxu0
        %711 = vmatpush.msra.mxu0 %v647
        %712 = vmatpush.msra.mxu0 %v646
        %713 = vmatpush.msra.mxu0 %v645
        %714 = vmatpush.msra.mxu0 %v644
        %715 = vmatpush.msra.mxu0 %v643
        %716 = vmatpush.msra.mxu0 %v642
        %717 = vmatpush.msra.mxu0 %v641
        %718 = vmatpush.msra.mxu0 %v640
        %719 = vmatpush.msra.mxu0 %v639
        %720 = vmatpush.msra.mxu0 %v638
        %721 = vmatpush.msra.mxu0 %v637
        %722 = vmatpush.msra.mxu0 %v636
        %723 = vmatpush.msra.mxu0 %v635
        %724 = vmatpush.msra.mxu0 %v634
        %725 = vmatpush.msra.mxu0 %v633
        %726 = vmatpush.msra.mxu0 %v632
        %727 = vmatmul.f32.gmra.mxu0 %v612
        %v728 = vpop.f32.mrf.mxu0
        %v729 = vadd.f32 %v706, %v728
        %730 = vmatmul.f32.gmra.mxu0 %v613
        %v731 = vpop.f32.mrf.mxu0
        %v732 = vadd.f32 %v709, %v731
        %733 = vdwg.mxu0
        %v734 = vperm.slane %v682, 0
        %v735 = vadd.f32 %v729, %v734
        %v736 = vadd.f32 %v732, %v734
        %v737 = vmax.f32 %v735, 0.0
        %v738 = vmax.f32 %v736, 0.0
        %739 = vst [vmem:[#allocation2 + $0x10] sm:$0xff] %v737
        %740 = vst [vmem:[#allocation2 + $0x18] sm:$0xff] %v738
        %v741 = vld [vmem:[#allocation2 + $0xc] sm:$0xff]
        %v742 = vld [vmem:[#allocation2 + $0x14] sm:$0xff]
        %743 = vmatpush.msra.mxu0 %v664
        %744 = vmatpush.msra.mxu0 %v663
        %745 = vmatpush.msra.mxu0 %v662
        %746 = vmatpush.msra.mxu0 %v661
        %747 = vmatpush.msra.mxu0 %v660
        %748 = vmatpush.msra.mxu0 %v659
        %749 = vmatpush.msra.mxu0 %v658
        %750 = vmatpush.msra.mxu0 %v657
        %751 = vmatpush.msra.mxu0 %v656
        %752 = vmatpush.msra.mxu0 %v655
        %753 = vmatpush.msra.mxu0 %v654
        %754 = vmatpush.msra.mxu0 %v653
        %755 = vmatpush.msra.mxu0 %v652
        %756 = vmatpush.msra.mxu0 %v651
        %757 = vmatpush.msra.mxu0 %v650
        %758 = vmatpush.msra.mxu0 %v649
        %759 = vmatmul.f32.gmra.mxu0 %v741
        %v760 = vpop.f32.mrf.mxu0
        %v761 = vadd.f32 0.0, %v760
        %762 = vmatmul.f32.gmra.mxu0 %v742
        %v763 = vpop.f32.mrf.mxu0
        %v764 = vadd.f32 0.0, %v763
        %765 = vdwg.mxu0
        %766 = vmatpush.msra.mxu0 %v681
        %767 = vmatpush.msra.mxu0 %v680
        %768 = vmatpush.msra.mxu0 %v679
        %769 = vmatpush.msra.mxu0 %v678
        %770 = vmatpush.msra.mxu0 %v677
        %771 = vmatpush.msra.mxu0 %v676
        %772 = vmatpush.msra.mxu0 %v675
        %773 = vmatpush.msra.mxu0 %v674
        %774 = vmatpush.msra.mxu0 %v673
        %775 = vmatpush.msra.mxu0 %v672
        %776 = vmatpush.msra.mxu0 %v671
        %777 = vmatpush.msra.mxu0 %v670
        %778 = vmatpush.msra.mxu0 %v669
        %779 = vmatpush.msra.mxu0 %v668
        %780 = vmatpush.msra.mxu0 %v667
        %781 = vmatpush.msra.mxu0 %v666
        %782 = vmatmul.f32.gmra.mxu0 %v737
        %v783 = vpop.f32.mrf.mxu0
        %v784 = vadd.f32 %v761, %v783
        %785 = vmatmul.f32.gmra.mxu0 %v738
        %v786 = vpop.f32.mrf.mxu0
        %v787 = vadd.f32 %v764, %v786
        %788 = vdwg.mxu0
        %v789 = vperm.slane %v683, 0
        %v790 = vadd.f32 %v784, %v789
        %v791 = vadd.f32 %v787, %v789
        %v792 = vmax.f32 %v790, 0.0
        %v793 = vmax.f32 %v791, 0.0
        %v794 = vadd.f32 %v792, %v612
        %v795 = vadd.f32 %v793, %v613
        %s796 = scalar_lea.vmem [#allocation3], 1536
        %v797 = vld [vmem:[%s796] sm:$0xff]
        %v798 = vld [vmem:[%s796 + $0x8] sm:$0xff]
        %v799 = vld [vmem:[%s796 + $0x10] sm:$0xff]
        %v800 = vld [vmem:[%s796 + $0x18] sm:$0xff]
        %v801 = vld [vmem:[%s796 + $0x20] sm:$0xff]
        %v802 = vld [vmem:[%s796 + $0x28] sm:$0xff]
        %v803 = vld [vmem:[%s796 + $0x30] sm:$0xff]
        %v804 = vld [vmem:[%s796 + $0x38] sm:$0xff]
        %v805 = vld [vmem:[%s796 + $0x40] sm:$0xff]
        %v806 = vld [vmem:[%s796 + $0x48] sm:$0xff]
        %v807 = vld [vmem:[%s796 + $0x50] sm:$0xff]
        %v808 = vld [vmem:[%s796 + $0x58] sm:$0xff]
        %v809 = vld [vmem:[%s796 + $0x60] sm:$0xff]
        %v810 = vld [vmem:[%s796 + $0x68] sm:$0xff]
        %v811 = vld [vmem:[%s796 + $0x70] sm:$0xff]
        %v812 = vld [vmem:[%s796 + $0x78] sm:$0xff]
        %s813 = scalar_lea.vmem [#allocation3], 1664
        %v814 = vld [vmem:[%s813] sm:$0xff]
        %v815 = vld [vmem:[%s813 + $0x8] sm:$0xff]
        %v816 = vld [vmem:[%s813 + $0x10] sm:$0xff]
        %v817 = vld [vmem:[%s813 + $0x18] sm:$0xff]
        %v818 = vld [vmem:[%s813 + $0x20] sm:$0xff]
        %v819 = vld [vmem:[%s813 + $0x28] sm:$0xff]
        %v820 = vld [vmem:[%s813 + $0x30] sm:$0xff]
        %v821 = vld [vmem:[%s813 + $0x38] sm:$0xff]
        %v822 = vld [vmem:[%s813 + $0x40] sm:$0xff]
        %v823 = vld [vmem:[%s813 + $0x48] sm:$0xff]
        %v824 = vld [vmem:[%s813 + $0x50] sm:$0xff]
        %v825 = vld [vmem:[%s813 + $0x58] sm:$0xff]
        %v826 = vld [vmem:[%s813 + $0x60] sm:$0xff]
        %v827 = vld [vmem:[%s813 + $0x68] sm:$0xff]
        %v828 = vld [vmem:[%s813 + $0x70] sm:$0xff]
        %v829 = vld [vmem:[%s813 + $0x78] sm:$0xff]
        %s830 = scalar_lea.vmem [#allocation3], 1792
        %v831 = vld [vmem:[%s830] sm:$0xff]
        %v832 = vld [vmem:[%s830 + $0x8] sm:$0xff]
        %v833 = vld [vmem:[%s830 + $0x10] sm:$0xff]
        %v834 = vld [vmem:[%s830 + $0x18] sm:$0xff]
        %v835 = vld [vmem:[%s830 + $0x20] sm:$0xff]
        %v836 = vld [vmem:[%s830 + $0x28] sm:$0xff]
        %v837 = vld [vmem:[%s830 + $0x30] sm:$0xff]
        %v838 = vld [vmem:[%s830 + $0x38] sm:$0xff]
        %v839 = vld [vmem:[%s830 + $0x40] sm:$0xff]
        %v840 = vld [vmem:[%s830 + $0x48] sm:$0xff]
        %v841 = vld [vmem:[%s830 + $0x50] sm:$0xff]
        %v842 = vld [vmem:[%s830 + $0x58] sm:$0xff]
        %v843 = vld [vmem:[%s830 + $0x60] sm:$0xff]
        %v844 = vld [vmem:[%s830 + $0x68] sm:$0xff]
        %v845 = vld [vmem:[%s830 + $0x70] sm:$0xff]
        %v846 = vld [vmem:[%s830 + $0x78] sm:$0xff]
        %s847 = scalar_lea.vmem [#allocation3], 1920
        %v848 = vld [vmem:[%s847] sm:$0xff]
        %v849 = vld [vmem:[%s847 + $0x8] sm:$0xff]
        %v850 = vld [vmem:[%s847 + $0x10] sm:$0xff]
        %v851 = vld [vmem:[%s847 + $0x18] sm:$0xff]
        %v852 = vld [vmem:[%s847 + $0x20] sm:$0xff]
        %v853 = vld [vmem:[%s847 + $0x28] sm:$0xff]
        %v854 = vld [vmem:[%s847 + $0x30] sm:$0xff]
        %v855 = vld [vmem:[%s847 + $0x38] sm:$0xff]
        %v856 = vld [vmem:[%s847 + $0x40] sm:$0xff]
        %v857 = vld [vmem:[%s847 + $0x48] sm:$0xff]
        %v858 = vld [vmem:[%s847 + $0x50] sm:$0xff]
        %v859 = vld [vmem:[%s847 + $0x58] sm:$0xff]
        %v860 = vld [vmem:[%s847 + $0x60] sm:$0xff]
        %v861 = vld [vmem:[%s847 + $0x68] sm:$0xff]
        %v862 = vld [vmem:[%s847 + $0x70] sm:$0xff]
        %v863 = vld [vmem:[%s847 + $0x78] sm:$0xff]
        %v864 = vld [vmem:[#allocation5 + $0x6] sm:$0x1]
        %v865 = vld [vmem:[#allocation5 + $0x7] sm:$0x1]
        %866 = vst [vmem:[#allocation2 + $0x10] sm:$0xff] %v794
        %867 = vst [vmem:[#allocation2 + $0x18] sm:$0xff] %v795
        %v868 = vld [vmem:[#allocation2 + $0x8] sm:$0xff]
        %v869 = vld [vmem:[#allocation2 + $0x10] sm:$0xff]
        %870 = vmatpush.msra.mxu0 %v812
        %871 = vmatpush.msra.mxu0 %v811
        %872 = vmatpush.msra.mxu0 %v810
        %873 = vmatpush.msra.mxu0 %v809
        %874 = vmatpush.msra.mxu0 %v808
        %875 = vmatpush.msra.mxu0 %v807
        %876 = vmatpush.msra.mxu0 %v806
        %877 = vmatpush.msra.mxu0 %v805
        %878 = vmatpush.msra.mxu0 %v804
        %879 = vmatpush.msra.mxu0 %v803
        %880 = vmatpush.msra.mxu0 %v802
        %881 = vmatpush.msra.mxu0 %v801
        %882 = vmatpush.msra.mxu0 %v800
        %883 = vmatpush.msra.mxu0 %v799
        %884 = vmatpush.msra.mxu0 %v798
        %885 = vmatpush.msra.mxu0 %v797
        %886 = vmatmul.f32.gmra.mxu0 %v868
        %v887 = vpop.f32.mrf.mxu0
        %v888 = vadd.f32 0.0, %v887
        %889 = vmatmul.f32.gmra.mxu0 %v869
        %v890 = vpop.f32.mrf.mxu0
        %v891 = vadd.f32 0.0, %v890
        %892 = vdwg.mxu0
        %893 = vmatpush.msra.mxu0 %v829
        %894 = vmatpush.msra.mxu0 %v828
        %895 = vmatpush.msra.mxu0 %v827
        %896 = vmatpush.msra.mxu0 %v826
        %897 = vmatpush.msra.mxu0 %v825
        %898 = vmatpush.msra.mxu0 %v824
        %899 = vmatpush.msra.mxu0 %v823
        %900 = vmatpush.msra.mxu0 %v822
        %901 = vmatpush.msra.mxu0 %v821
        %902 = vmatpush.msra.mxu0 %v820
        %903 = vmatpush.msra.mxu0 %v819
        %904 = vmatpush.msra.mxu0 %v818
        %905 = vmatpush.msra.mxu0 %v817
        %906 = vmatpush.msra.mxu0 %v816
        %907 = vmatpush.msra.mxu0 %v815
        %908 = vmatpush.msra.mxu0 %v814
        %909 = vmatmul.f32.gmra.mxu0 %v794
        %v910 = vpop.f32.mrf.mxu0
        %v911 = vadd.f32 %v888, %v910
        %912 = vmatmul.f32.gmra.mxu0 %v795
        %v913 = vpop.f32.mrf.mxu0
        %v914 = vadd.f32 %v891, %v913
        %915 = vdwg.mxu0
        %v916 = vperm.slane %v864, 0
        %v917 = vadd.f32 %v911, %v916
        %v918 = vadd.f32 %v914, %v916
        %v919 = vmax.f32 %v917, 0.0
        %v920 = vmax.f32 %v918, 0.0
        %921 = vst [vmem:[#allocation2 + $0x10] sm:$0xff] %v919
        %922 = vst [vmem:[#allocation2 + $0x18] sm:$0xff] %v920
        %v923 = vld [vmem:[#allocation2 + $0x8] sm:$0xff]
        %v924 = vld [vmem:[#allocation2 + $0x10] sm:$0xff]
        %925 = vmatpush.msra.mxu0 %v846
        %926 = vmatpush.msra.mxu0 %v845
        %927 = vmatpush.msra.mxu0 %v844
        %928 = vmatpush.msra.mxu0 %v843
        %929 = vmatpush.msra.mxu0 %v842
        %930 = vmatpush.msra.mxu0 %v841
        %931 = vmatpush.msra.mxu0 %v840
        %932 = vmatpush.msra.mxu0 %v839
        %933 = vmatpush.msra.mxu0 %v838
        %934 = vmatpush.msra.mxu0 %v837
        %935 = vmatpush.msra.mxu0 %v836
        %936 = vmatpush.msra.mxu0 %v835
        %937 = vmatpush.msra.mxu0 %v834
        %938 = vmatpush.msra.mxu0 %v833
        %939 = vmatpush.msra.mxu0 %v832
        %940 = vmatpush.msra.mxu0 %v831
        %941 = vmatmul.f32.gmra.mxu0 %v923
        %v942 = vpop.f32.mrf.mxu0
        %v943 = vadd.f32 0.0, %v942
        %944 = vmatmul.f32.gmra.mxu0 %v924
        %v945 = vpop.f32.mrf.mxu0
        %v946 = vadd.f32 0.0, %v945
        %947 = vdwg.mxu0
        %948 = vmatpush.msra.mxu0 %v863
        %949 = vmatpush.msra.mxu0 %v862
        %950 = vmatpush.msra.mxu0 %v861
        %951 = vmatpush.msra.mxu0 %v860
        %952 = vmatpush.msra.mxu0 %v859
        %953 = vmatpush.msra.mxu0 %v858
        %954 = vmatpush.msra.mxu0 %v857
        %955 = vmatpush.msra.mxu0 %v856
        %956 = vmatpush.msra.mxu0 %v855
        %957 = vmatpush.msra.mxu0 %v854
        %958 = vmatpush.msra.mxu0 %v853
        %959 = vmatpush.msra.mxu0 %v852
        %960 = vmatpush.msra.mxu0 %v851
        %961 = vmatpush.msra.mxu0 %v850
        %962 = vmatpush.msra.mxu0 %v849
        %963 = vmatpush.msra.mxu0 %v848
        %964 = vmatmul.f32.gmra.mxu0 %v919
        %v965 = vpop.f32.mrf.mxu0
        %v966 = vadd.f32 %v943, %v965
        %967 = vmatmul.f32.gmra.mxu0 %v920
        %v968 = vpop.f32.mrf.mxu0
        %v969 = vadd.f32 %v946, %v968
        %970 = vdwg.mxu0
        %v971 = vperm.slane %v865, 0
        %v972 = vadd.f32 %v966, %v971
        %v973 = vadd.f32 %v969, %v971
        %v974 = vmax.f32 %v972, 0.0
        %v975 = vmax.f32 %v973, 0.0
        %v976 = vadd.f32 %v974, %v794
        %v977 = vadd.f32 %v975, %v795
        %s978 = scalar_lea.vmem [#allocation3], 2176
        %v979 = vld [vmem:[%s978] sm:$0xff]
        %v980 = vld [vmem:[%s978 + $0x8] sm:$0xff]
        %v981 = vld [vmem:[%s978 + $0x10] sm:$0xff]
        %v982 = vld [vmem:[%s978 + $0x18] sm:$0xff]
        %v983 = vld [vmem:[%s978 + $0x20] sm:$0xff]
        %v984 = vld [vmem:[%s978 + $0x28] sm:$0xff]
        %v985 = vld [vmem:[%s978 + $0x30] sm:$0xff]
        %v986 = vld [vmem:[%s978 + $0x38] sm:$0xff]
        %v987 = vld [vmem:[%s978 + $0x40] sm:$0xff]
        %v988 = vld [vmem:[%s978 + $0x48] sm:$0xff]
        %v989 = vld [vmem:[%s978 + $0x50] sm:$0xff]
        %v990 = vld [vmem:[%s978 + $0x58] sm:$0xff]
        %v991 = vld [vmem:[%s978 + $0x60] sm:$0xff]
        %v992 = vld [vmem:[%s978 + $0x68] sm:$0xff]
        %v993 = vld [vmem:[%s978 + $0x70] sm:$0xff]
        %v994 = vld [vmem:[%s978 + $0x78] sm:$0xff]
        %s995 = scalar_lea.vmem [#allocation3], 2432
        %v996 = vld [vmem:[%s995] sm:$0xff]
        %v997 = vld [vmem:[%s995 + $0x8] sm:$0xff]
        %v998 = vld [vmem:[%s995 + $0x10] sm:$0xff]
        %v999 = vld [vmem:[%s995 + $0x18] sm:$0xff]
        %v1000 = vld [vmem:[%s995 + $0x20] sm:$0xff]
        %v1001 = vld [vmem:[%s995 + $0x28] sm:$0xff]
        %v1002 = vld [vmem:[%s995 + $0x30] sm:$0xff]
        %v1003 = vld [vmem:[%s995 + $0x38] sm:$0xff]
        %v1004 = vld [vmem:[%s995 + $0x40] sm:$0xff]
        %v1005 = vld [vmem:[%s995 + $0x48] sm:$0xff]
        %v1006 = vld [vmem:[%s995 + $0x50] sm:$0xff]
        %v1007 = vld [vmem:[%s995 + $0x58] sm:$0xff]
        %v1008 = vld [vmem:[%s995 + $0x60] sm:$0xff]
        %v1009 = vld [vmem:[%s995 + $0x68] sm:$0xff]
        %v1010 = vld [vmem:[%s995 + $0x70] sm:$0xff]
        %v1011 = vld [vmem:[%s995 + $0x78] sm:$0xff]
        %v1012 = vld [vmem:[#allocation5 + $0x8] sm:$0x1]
        %v1013 = vld [vmem:[#allocation5 + $0x9] sm:$0x1]
        %v1014 = vperm.slane %v1012, 0
        %1015 = vmatpush.msra.mxu0 %v994
        %1016 = vmatpush.msra.mxu0 %v993
        %1017 = vmatpush.msra.mxu0 %v992
        %1018 = vmatpush.msra.mxu0 %v991
        %1019 = vmatpush.msra.mxu0 %v990
        %1020 = vmatpush.msra.mxu0 %v989
        %1021 = vmatpush.msra.mxu0 %v988
        %1022 = vmatpush.msra.mxu0 %v987
        %1023 = vmatpush.msra.mxu0 %v986
        %1024 = vmatpush.msra.mxu0 %v985
        %1025 = vmatpush.msra.mxu0 %v984
        %1026 = vmatpush.msra.mxu0 %v983
        %1027 = vmatpush.msra.mxu0 %v982
        %1028 = vmatpush.msra.mxu0 %v981
        %1029 = vmatpush.msra.mxu0 %v980
        %1030 = vmatpush.msra.mxu0 %v979
        %1031 = vmatmul.f32.gmra.mxu0 %v976
        %v1032 = vpop.f32.mrf.mxu0
        %v1033 = vadd.f32 %v1014, %v1032
        %1034 = vmatmul.f32.gmra.mxu0 %v977
        %v1035 = vpop.f32.mrf.mxu0
        %v1036 = vadd.f32 %v1014, %v1035
        %1037 = vdwg.mxu0
        %v1038 = vmax.f32 %v1033, 0.0
        %v1039 = vmax.f32 %v1036, 0.0
        %v1040 = vperm.slane %v1013, 0
        %1041 = vmatpush.msra.mxu0 %v1011
        %1042 = vmatpush.msra.mxu0 %v1010
        %1043 = vmatpush.msra.mxu0 %v1009
        %1044 = vmatpush.msra.mxu0 %v1008
        %1045 = vmatpush.msra.mxu0 %v1007
        %1046 = vmatpush.msra.mxu0 %v1006
        %1047 = vmatpush.msra.mxu0 %v1005
        %1048 = vmatpush.msra.mxu0 %v1004
        %1049 = vmatpush.msra.mxu0 %v1003
        %1050 = vmatpush.msra.mxu0 %v1002
        %1051 = vmatpush.msra.mxu0 %v1001
        %1052 = vmatpush.msra.mxu0 %v1000
        %1053 = vmatpush.msra.mxu0 %v999
        %1054 = vmatpush.msra.mxu0 %v998
        %1055 = vmatpush.msra.mxu0 %v997
        %1056 = vmatpush.msra.mxu0 %v996
        %1057 = vmatmul.f32.gmra.mxu0 %v1038
        %v1058 = vpop.f32.mrf.mxu0
        %v1059 = vadd.f32 %v1040, %v1058
        %1060 = vmatmul.f32.gmra.mxu0 %v1039
        %v1061 = vpop.f32.mrf.mxu0
        %v1062 = vadd.f32 %v1040, %v1061
        %1063 = vdwg.mxu0
        %v1064 = vmax.f32 %v1059, 0.0
        %v1065 = vmax.f32 %v1062, 0.0
        %v1066 = vadd.f32 %v1064, %v976
        %v1067 = vadd.f32 %v1065, %v977
        %s1068 = scalar_lea.vmem [#allocation3], 2688
        %v1069 = vld [vmem:[%s1068] sm:$0xff]
        %v1070 = vld [vmem:[%s1068 + $0x8] sm:$0xff]
        %v1071 = vld [vmem:[%s1068 + $0x10] sm:$0xff]
        %v1072 = vld [vmem:[%s1068 + $0x18] sm:$0xff]
        %v1073 = vld [vmem:[%s1068 + $0x20] sm:$0xff]
        %v1074 = vld [vmem:[%s1068 + $0x28] sm:$0xff]
        %v1075 = vld [vmem:[%s1068 + $0x30] sm:$0xff]
        %v1076 = vld [vmem:[%s1068 + $0x38] sm:$0xff]
        %v1077 = vld [vmem:[%s1068 + $0x40] sm:$0xff]
        %v1078 = vld [vmem:[%s1068 + $0x48] sm:$0xff]
        %v1079 = vld [vmem:[%s1068 + $0x50] sm:$0xff]
        %v1080 = vld [vmem:[%s1068 + $0x58] sm:$0xff]
        %v1081 = vld [vmem:[%s1068 + $0x60] sm:$0xff]
        %v1082 = vld [vmem:[%s1068 + $0x68] sm:$0xff]
        %v1083 = vld [vmem:[%s1068 + $0x70] sm:$0xff]
        %v1084 = vld [vmem:[%s1068 + $0x78] sm:$0xff]
        %v1085 = vld [vmem:[#allocation5 + $0xb] sm:$0x1]
        %v1086 = vperm.slane %v1085, 0
        %1087 = vmatpush.msra.mxu0 %v1084
        %1088 = vmatpush.msra.mxu0 %v1083
        %1089 = vmatpush.msra.mxu0 %v1082
        %1090 = vmatpush.msra.mxu0 %v1081
        %1091 = vmatpush.msra.mxu0 %v1080
        %1092 = vmatpush.msra.mxu0 %v1079
        %1093 = vmatpush.msra.mxu0 %v1078
        %1094 = vmatpush.msra.mxu0 %v1077
        %1095 = vmatpush.msra.mxu0 %v1076
        %1096 = vmatpush.msra.mxu0 %v1075
        %1097 = vmatpush.msra.mxu0 %v1074
        %1098 = vmatpush.msra.mxu0 %v1073
        %1099 = vmatpush.msra.mxu0 %v1072
        %1100 = vmatpush.msra.mxu0 %v1071
        %1101 = vmatpush.msra.mxu0 %v1070
        %1102 = vmatpush.msra.mxu0 %v1069
        %1103 = vmatmul.f32.gmra.mxu0 %v1066
        %v1104 = vpop.f32.mrf.mxu0
        %v1105 = vadd.f32 %v1086, %v1104
        %1106 = vmatmul.f32.gmra.mxu0 %v1067
        %v1107 = vpop.f32.mrf.mxu0
        %v1108 = vadd.f32 %v1086, %v1107
        %1109 = vdwg.mxu0
        %v1110 = vld [vmem:[#allocation5 + $0xc] sm:$0x1]
        %1111 = vst [vmem:[%s204] sm:$0x1] %v1110
        %1112 = vst [vmem:[%s204 + $0x1] sm:$0xff] %v1105
        %1113 = vst [vmem:[%s204 + $0x9] sm:$0xff] %v1108
        %p1114 = scmp.lt.s32.totalorder %s16, 1
        %s1115 = scalar_select %p1114, %s16, 1
        %s1116 = smul.addr %s1115, 3
        %s1117 = smul.addr %s1116, 8
        %s1118 = scalar_lea.vmem %s3, %s1117
        // Predicated region
        $region41: #{tcn_forward.1} parent=31 // pred_check
          %p1119 = pneg %p102
        $region42: #{tcn_forward.1} parent=31 // pred_check_branch
          %1121 = sbr.rel (%p1119) target = $region44
        $region43: #{tcn_forward.1} parent=31 // pred_region
          _
        $region44: #{tcn_forward.1} parent=31 // pred_fallthru
          _
      $region32: #{tcn_forward.1} parent=5 // pred_fallthru
        _
      %p1122 = scmp.le.s32.totalorder 2, %s11
      // Predicated region
      $region45: #{tcn_forward.1} parent=5 // pred_check
        %p1123 = pneg %p1122
      $region46: #{tcn_forward.1} parent=5 // pred_check_branch
        %1125 = sbr.rel (%p1123) target = $region48
      $region47: #{tcn_forward.1} parent=5 // pred_region
        %s1126 = ssub.s32 %s11, 2
        // Predicated region
        $region49: #{tcn_forward.1} parent=47 // pred_check
          %p1127 = pneg %p108
        $region50: #{tcn_forward.1} parent=47 // pred_check_branch
          %1129 = sbr.rel (%p1127) target = $region52
        $region51: #{tcn_forward.1} parent=47 // pred_region
          %p1130 = scmp.lt.s32.totalorder %s17, 1
          %s1131 = scalar_select %p1130, %s17, 1
          %s1132 = smul.addr %s1131, 3
          %s1133 = smul.addr %s1132, 8
          %s1134 = scalar_lea.vmem %s3, %s1133
        $region52: #{tcn_forward.1} parent=47 // pred_fallthru
          _
      $region48: #{tcn_forward.1} parent=5 // pred_fallthru
        _
    $region6: #{tcn_forward.1} parent=1 // loop_footer
      %s15 = sadd.s32 1, %s11
    $region7: #{tcn_forward.1} parent=1 // loop_footer_branch
      %10 = sbr.rel target = $region3
    $region8: #{tcn_forward.1} parent=1 // loop_exit
      _
    %1135 = vsyncpa [#allocation4], 1
    %s1136 = scalar_lea.sflag [#allocation4], 1
    %1137 = vsyncpa %s1136, 1
    %1138 = vsyncpa [#allocation6], 1

</llo_original>
